<compile_context>
chip_gen: v7x
topology: tpu7x:2x2x1
jax: 0.10.0
libtpu: 0.0.40
codegen_flags: <defaults>
</compile_context>

<pallas_src>
import functools

import jax
import jax.numpy as jnp
from jax.experimental import pallas as pl
from jax.experimental.pallas import tpu as pltpu

HIDDEN = 256   # fixed by GCN_liner_theta_1 = nn.Linear(input_dim, 256)
LANE = 128


def gcn2_kernel(h_ref, gamma_ref, beta_ref, wcat_ref, bcat_ref, mask_ref,
                out_ref, a_out_ref, *, n_real):
    H = h_ref[...]                                        # (Np, C) f32; rows >= n_real are 0

    # --- BatchNorm1d (fresh module => training mode => batch statistics,
    #     biased variance, eps=1e-5; gamma=1, beta=0 default init).
    #     Padded rows are exactly zero, so sums over Np rows equal sums over
    #     the n_real real rows; use E[x^2] - E[x]^2 with 1/n_real. ---
    inv_n = 1.0 / n_real
    mean = jnp.sum(H, axis=0, keepdims=True) * inv_n      # (1, C)
    ex2 = jnp.sum(H * H, axis=0, keepdims=True) * inv_n
    var = ex2 - mean * mean
    Hbn = (H - mean) * jax.lax.rsqrt(var + 1e-5)
    Hbn = Hbn * gamma_ref[...] + beta_ref[...]            # (Np, C) f32

    # --- Fused projections: theta (C->256) and out (C->out_pad) concatenated
    #     into one lane-dense bf16 MXU matmul, f32 accumulation, f32 bias. ---
    proj = jnp.dot(Hbn.astype(jnp.bfloat16), wcat_ref[...],
                   preferred_element_type=jnp.float32) + bcat_ref[...]
    Hxx1 = proj[:, :HIDDEN]                               # (Np, 256) f32
    Hout = proj[:, HIDDEN:]                               # (Np, out_pad); pad cols == 0

    # --- S = Hxx1 @ Hxx1.T as an NT dot_general (MXU consumes RHS directly,
    #     no XLU transpose). ---
    Hxx1_bf = Hxx1.astype(jnp.bfloat16)
    S = jax.lax.dot_general(
        Hxx1_bf, Hxx1_bf,
        dimension_numbers=(((1,), (1,)), ((), ())),
        preferred_element_type=jnp.float32)               # (Np, Np) f32

    # --- A = clamp(sigmoid(S), min=0.1) * mask + I.
    #     sigmoid via a single tanh (one EUP push per element); identity
    #     generated in-kernel (no eye DMA, padded nodes -> isolated self-loops). ---
    sig = 0.5 * jnp.tanh(0.5 * S) + 0.5
    A = jnp.maximum(sig, 0.1) * mask_ref[...].astype(jnp.float32)
    row = jax.lax.broadcasted_iota(jnp.int32, A.shape, 0)
    col = jax.lax.broadcasted_iota(jnp.int32, A.shape, 1)
    A = jnp.where(row == col, A + 1.0, A)

    # --- D = rowsum(A); A_hat = D^-1/2 A D^-1/2 never materialized:
    #     (D_hat @ A @ D_hat) @ X == dinv * (A @ (dinv * X)).  bf16 operands,
    #     f32 accumulation -> guaranteed single-pass MXU. ---
    d = jnp.sum(A, axis=1, keepdims=True)                 # (Np, 1), >= 1 via self-loop
    dinv = jax.lax.rsqrt(d)                               # D^-0.5
    out = dinv * jnp.dot(A.astype(jnp.bfloat16),
                         (dinv * Hout).astype(jnp.bfloat16),
                         preferred_element_type=jnp.float32)   # (Np, out_pad) f32

    # --- LeakyReLU (default negative_slope = 0.01) ---
    out = jnp.where(out >= 0, out, 0.01 * out)

    out_ref[...] = out        # lane-dense store (last dim multiple of 128)
    a_out_ref[...] = A        # lane-dense (Np multiple of 128)


def gcn2_forward(H, gamma, beta, w_theta, b_theta, w_out, b_out, mask):
    """Forward of GCN_2 (model='normal').  H: (N, C) or (B, N, C) of
    independent graphs.  Returns (output, A) per graph."""
    squeeze = (H.ndim == 2)
    if squeeze:
        H = H[None]
    B, N, C = H.shape
    out_dim = w_out.shape[1]
    out_pad = ((out_dim + LANE - 1) // LANE) * LANE
    Np = ((N + LANE - 1) // LANE) * LANE    # lane-dense S/A/mask, full MXU tiles

    # Zero-pad nodes: padded H rows are 0, padded mask rows/cols are 0, so
    # padded nodes become isolated self-loops that never touch real rows.
    Hp = jnp.zeros((B, Np, C), jnp.float32).at[:, :N, :].set(H.astype(jnp.float32))
    mask_p = jnp.zeros((Np, Np), jnp.bfloat16).at[:N, :N].set(mask.astype(jnp.bfloat16))

    # Fuse + zero-pad projection weights: padded output columns stay exactly 0.
    w_out_p = jnp.zeros((C, out_pad), jnp.float32).at[:, :out_dim].set(w_out)
    b_out_p = jnp.zeros((1, out_pad), jnp.float32).at[:, :out_dim].set(
        b_out.reshape(1, -1))
    w_cat = jnp.concatenate([w_theta, w_out_p], axis=1).astype(jnp.bfloat16)
    b_cat = jnp.concatenate([b_theta.reshape(1, -1), b_out_p],
                            axis=1).astype(jnp.float32)   # bias stays f32

    def fixed(*shape):   # grid-invariant input -> single-buffered (VMEM hygiene)
        return pl.BlockSpec(shape, lambda b: (0,) * len(shape),
                            pipeline_mode=pl.Buffered(1))

    # Advisory cost for XLA's scheduler around the custom call.
    flops = B * (2 * Np * C * (HIDDEN + out_pad)
                 + 2 * Np * Np * HIDDEN
                 + 2 * Np * Np * out_pad)
    bytes_accessed = (B * (Np * C * 4 + Np * Np * 4 + Np * out_pad * 4)
                      + Np * Np * 2 + C * (HIDDEN + out_pad) * 2)
    cost = pl.CostEstimate(flops=int(flops),
                           transcendentals=int(B * Np * Np),
                           bytes_accessed=int(bytes_accessed))

    # Scoped-VMEM limit sized from N (mask + S + A + double-buffered A output
    # + projection intermediates), floored at 32 MiB, capped at physical.
    need = (20 * Np * Np + Np * (HIDDEN + out_pad) * 8 + Np * C * 8 + (2 << 20))
    vmem_limit = int(min(max(need, 32 * 2 ** 20), 128 * 2 ** 20))

    kernel = functools.partial(gcn2_kernel, n_real=float(N))

    out, A = pl.pallas_call(
        kernel,
        grid=(B,),
        in_specs=[
            pl.BlockSpec((None, Np, C), lambda b: (b, 0, 0)),    # H: one graph / step
            fixed(1, C), fixed(1, C),                             # gamma, beta
            fixed(C, HIDDEN + out_pad), fixed(1, HIDDEN + out_pad),
            fixed(Np, Np),                                        # mask (bf16)
        ],
        out_specs=(
            pl.BlockSpec((None, Np, out_pad), lambda b: (b, 0, 0)),
            pl.BlockSpec((None, Np, Np), lambda b: (b, 0, 0)),
        ),
        out_shape=(
            jax.ShapeDtypeStruct((B, Np, out_pad), jnp.float32),
            jax.ShapeDtypeStruct((B, Np, Np), jnp.float32),
        ),
        compiler_params=pltpu.CompilerParams(
            # TODO(synk): on v7x use pltpu.CORE_PARALLEL here to shard graphs
            # across both TensorCores; plain "parallel" is the portable choice.
            dimension_semantics=("parallel",),
            vmem_limit_bytes=vmem_limit),
        cost_estimate=cost,
    )(Hp, gamma, beta, w_cat, b_cat, mask_p)

    # TODO(synk): for N >~ 1200 on v7x, add a row-tiled two-pass (rowsum, then
    # scaled matmul) variant so the N^2 tensors fit 64 MiB VMEM.
    out = out[:, :N, :out_dim]
    A = A[:, :N, :N]
    if squeeze:
        out, A = out[0], A[0]
    return out, A


if __name__ == "__main__":
    # Small shapes consistent with the module: B independent graphs of N nodes,
    # C=input_dim features, OUT=output_dim.
    B, N, C, OUT = 2, 64, 32, 16

    key = jax.random.PRNGKey(0)
    k_h, k_a, k_wt, k_bt, k_wo, k_bo = jax.random.split(key, 6)

    H = jax.random.normal(k_h, (B, N, C), dtype=jnp.float32)

    # Synthetic non-negative symmetric adjacency; mask = ceil(A * 1e-5) exactly
    # as in GCN_2.__init__.
    r = jax.random.uniform(k_a, (N, N), dtype=jnp.float32)
    A_adj = jnp.where(r > 0.5, r, 0.0)
    A_adj = 0.5 * (A_adj + A_adj.T)
    mask = jnp.ceil(A_adj * 1e-5)

    # BatchNorm1d params (PyTorch default init: weight=1, bias=0), as (1, C).
    gamma = jnp.ones((1, C), dtype=jnp.float32)
    beta = jnp.zeros((1, C), dtype=jnp.float32)

    # Linear params, pre-transposed to (in, out); biases (1, out).
    w_theta = jax.random.normal(k_wt, (C, HIDDEN), dtype=jnp.float32) / jnp.sqrt(C * 1.0)
    b_theta = jax.random.normal(k_bt, (1, HIDDEN), dtype=jnp.float32) * 0.01
    w_out = jax.random.normal(k_wo, (C, OUT), dtype=jnp.float32) / jnp.sqrt(C * 1.0)
    b_out = jax.random.normal(k_bo, (1, OUT), dtype=jnp.float32) * 0.01

    # TODO(synk): sigma1 parameter exists in __init__ but is unused in forward;
    # the model != 'normal' branch (extra clamp) is the non-default path.

    out, A = gcn2_forward(H, gamma, beta, w_theta, b_theta, w_out, b_out, mask)
    jax.block_until_ready((out, A))

    assert out.shape == (B, N, OUT) and A.shape == (B, N, N)
    assert bool(jnp.all(jnp.isfinite(out))) and bool(jnp.all(jnp.isfinite(A)))
    print("KERNEL_OK")
</pallas_src>

<mosaic_0001>
module attributes {stable_mosaic.version = 11 : i64} {
  func.func @gcn2_kernel(%arg0: i32, %arg1: memref<1x128x32xf32, #tpu.memory_space<vmem>>, %arg2: memref<1x32xf32, #tpu.memory_space<vmem>>, %arg3: memref<1x32xf32, #tpu.memory_space<vmem>>, %arg4: memref<32x384xbf16, #tpu.memory_space<vmem>>, %arg5: memref<1x384xf32, #tpu.memory_space<vmem>>, %arg6: memref<128x128xbf16, #tpu.memory_space<vmem>>, %arg7: memref<1x128x128xf32, #tpu.memory_space<vmem>>, %arg8: memref<1x128x128xf32, #tpu.memory_space<vmem>>) attributes {dimension_semantics = [#tpu.dimension_semantics<parallel>], iteration_bounds = array<i64: 2>, scalar_prefetch = 0 : i64, scratch_operands = 0 : i64, tpu.core_type = #tpu.core_type<tc>, window_params = [{transform_indices = @transform_0, window_bounds = array<i64: 1, 128, 32>}, {pipeline_mode = #tpu.pipeline_mode<synchronous>, transform_indices = @transform_1, window_bounds = array<i64: 1, 32>}, {pipeline_mode = #tpu.pipeline_mode<synchronous>, transform_indices = @transform_2, window_bounds = array<i64: 1, 32>}, {pipeline_mode = #tpu.pipeline_mode<synchronous>, transform_indices = @transform_3, window_bounds = array<i64: 32, 384>}, {pipeline_mode = #tpu.pipeline_mode<synchronous>, transform_indices = @transform_4, window_bounds = array<i64: 1, 384>}, {pipeline_mode = #tpu.pipeline_mode<synchronous>, transform_indices = @transform_5, window_bounds = array<i64: 128, 128>}, {transform_indices = @transform_6, window_bounds = array<i64: 1, 128, 128>}, {transform_indices = @transform_7, window_bounds = array<i64: 1, 128, 128>}]} {
    %c0 = arith.constant 0 : index
    %c0_0 = arith.constant 0 : index
    %c0_1 = arith.constant 0 : index
    %0 = vector.load %arg1[%c0, %c0_0, %c0_1] : memref<1x128x32xf32, #tpu.memory_space<vmem>>, vector<1x128x32xf32>
    %1 = vector.shape_cast %0 : vector<1x128x32xf32> to vector<128x32xf32>
    %cst = arith.constant dense<0.000000e+00> : vector<32xf32>
    %2 = vector.multi_reduction <add>, %1, %cst [0] : vector<128x32xf32> to vector<32xf32>
    %3 = vector.shape_cast %2 : vector<32xf32> to vector<1x32xf32>
    %cst_2 = arith.constant 1.562500e-02 : f32
    %4 = vector.broadcast %cst_2 : f32 to vector<1x32xf32>
    %5 = arith.mulf %3, %4 : vector<1x32xf32>
    %6 = arith.mulf %1, %1 : vector<128x32xf32>
    %cst_3 = arith.constant dense<0.000000e+00> : vector<32xf32>
    %7 = vector.multi_reduction <add>, %6, %cst_3 [0] : vector<128x32xf32> to vector<32xf32>
    %8 = vector.shape_cast %7 : vector<32xf32> to vector<1x32xf32>
    %cst_4 = arith.constant 1.562500e-02 : f32
    %9 = vector.broadcast %cst_4 : f32 to vector<1x32xf32>
    %10 = arith.mulf %8, %9 : vector<1x32xf32>
    %11 = arith.mulf %5, %5 : vector<1x32xf32>
    %12 = arith.subf %10, %11 : vector<1x32xf32>
    %13 = vector.broadcast %5 : vector<1x32xf32> to vector<128x32xf32>
    %14 = arith.subf %1, %13 : vector<128x32xf32>
    %cst_5 = arith.constant 9.99999974E-6 : f32
    %15 = vector.broadcast %cst_5 : f32 to vector<1x32xf32>
    %16 = arith.addf %12, %15 : vector<1x32xf32>
    %17 = math.rsqrt %16 : vector<1x32xf32>
    %18 = vector.broadcast %17 : vector<1x32xf32> to vector<128x32xf32>
    %19 = arith.mulf %14, %18 : vector<128x32xf32>
    %c0_6 = arith.constant 0 : index
    %c0_7 = arith.constant 0 : index
    %20 = vector.load %arg2[%c0_6, %c0_7] : memref<1x32xf32, #tpu.memory_space<vmem>>, vector<1x32xf32>
    %21 = vector.broadcast %20 : vector<1x32xf32> to vector<128x32xf32>
    %22 = arith.mulf %19, %21 : vector<128x32xf32>
    %c0_8 = arith.constant 0 : index
    %c0_9 = arith.constant 0 : index
    %23 = vector.load %arg3[%c0_8, %c0_9] : memref<1x32xf32, #tpu.memory_space<vmem>>, vector<1x32xf32>
    %24 = vector.broadcast %23 : vector<1x32xf32> to vector<128x32xf32>
    %25 = arith.addf %22, %24 : vector<128x32xf32>
    %26 = arith.truncf %25 : vector<128x32xf32> to vector<128x32xbf16>
    %c0_10 = arith.constant 0 : index
    %c0_11 = arith.constant 0 : index
    %27 = vector.load %arg4[%c0_10, %c0_11] : memref<32x384xbf16, #tpu.memory_space<vmem>>, vector<32x384xbf16>
    %cst_12 = arith.constant dense<0.000000e+00> : vector<128x384xf32>
    %28 = tpu.matmul %26, %27, %cst_12 {dimension_numbers = #tpu.dot_dimension_numbers<[1], [0], [0], [1], [0, 0, 1, 1], [], []>} : vector<128x32xbf16>, vector<32x384xbf16>, vector<128x384xf32> -> vector<128x384xf32>
    %c0_13 = arith.constant 0 : index
    %c0_14 = arith.constant 0 : index
    %29 = vector.load %arg5[%c0_13, %c0_14] : memref<1x384xf32, #tpu.memory_space<vmem>>, vector<1x384xf32>
    %30 = vector.broadcast %29 : vector<1x384xf32> to vector<128x384xf32>
    %31 = arith.addf %28, %30 : vector<128x384xf32>
    %32 = vector.extract_strided_slice %31 {offsets = [0, 0], sizes = [128, 256], strides = [1, 1]} : vector<128x384xf32> to vector<128x256xf32>
    %33 = vector.extract_strided_slice %31 {offsets = [0, 256], sizes = [128, 128], strides = [1, 1]} : vector<128x384xf32> to vector<128x128xf32>
    %34 = arith.truncf %32 : vector<128x256xf32> to vector<128x256xbf16>
    %cst_15 = arith.constant dense<0.000000e+00> : vector<128x128xf32>
    %35 = tpu.matmul %34, %34, %cst_15 {dimension_numbers = #tpu.dot_dimension_numbers<[1], [1], [0], [0], [0, 0, 1, 0], [], []>} : vector<128x256xbf16>, vector<128x256xbf16>, vector<128x128xf32> -> vector<128x128xf32>
    %cst_16 = arith.constant 5.000000e-01 : f32
    %36 = vector.broadcast %cst_16 : f32 to vector<128x128xf32>
    %37 = arith.mulf %36, %35 : vector<128x128xf32>
    %38 = math.tanh %37 : vector<128x128xf32>
    %cst_17 = arith.constant 5.000000e-01 : f32
    %39 = vector.broadcast %cst_17 : f32 to vector<128x128xf32>
    %40 = arith.mulf %39, %38 : vector<128x128xf32>
    %cst_18 = arith.constant 5.000000e-01 : f32
    %41 = vector.broadcast %cst_18 : f32 to vector<128x128xf32>
    %42 = arith.addf %40, %41 : vector<128x128xf32>
    %cst_19 = arith.constant 1.000000e-01 : f32
    %43 = vector.broadcast %cst_19 : f32 to vector<128x128xf32>
    %44 = arith.maximumf %42, %43 : vector<128x128xf32>
    %c0_20 = arith.constant 0 : index
    %c0_21 = arith.constant 0 : index
    %45 = vector.load %arg6[%c0_20, %c0_21] : memref<128x128xbf16, #tpu.memory_space<vmem>>, vector<128x128xbf16>
    %46 = arith.extf %45 : vector<128x128xbf16> to vector<128x128xf32>
    %47 = arith.mulf %44, %46 : vector<128x128xf32>
    %48 = tpu.iota {dimensions = array<i32: 0>} : vector<128x128xi32>
    %49 = tpu.iota {dimensions = array<i32: 1>} : vector<128x128xi32>
    %50 = arith.cmpi eq, %48, %49 : vector<128x128xi32>
    %cst_22 = arith.constant 1.000000e+00 : f32
    %51 = vector.broadcast %cst_22 : f32 to vector<128x128xf32>
    %52 = arith.addf %47, %51 : vector<128x128xf32>
    %53 = arith.select %50, %52, %47 : vector<128x128xi1>, vector<128x128xf32>
    %cst_23 = arith.constant dense<0.000000e+00> : vector<128xf32>
    %54 = vector.multi_reduction <add>, %53, %cst_23 [1] : vector<128x128xf32> to vector<128xf32>
    %55 = vector.shape_cast %54 : vector<128xf32> to vector<128x1xf32>
    %56 = math.rsqrt %55 : vector<128x1xf32>
    %57 = arith.truncf %53 : vector<128x128xf32> to vector<128x128xbf16>
    %58 = vector.broadcast %56 : vector<128x1xf32> to vector<128x128xf32>
    %59 = arith.mulf %58, %33 : vector<128x128xf32>
    %60 = arith.truncf %59 : vector<128x128xf32> to vector<128x128xbf16>
    %cst_24 = arith.constant dense<0.000000e+00> : vector<128x128xf32>
    %61 = tpu.matmul %57, %60, %cst_24 {dimension_numbers = #tpu.dot_dimension_numbers<[1], [0], [0], [1], [0, 0, 1, 1], [], []>} : vector<128x128xbf16>, vector<128x128xbf16>, vector<128x128xf32> -> vector<128x128xf32>
    %62 = vector.broadcast %56 : vector<128x1xf32> to vector<128x128xf32>
    %63 = arith.mulf %62, %61 : vector<128x128xf32>
    %cst_25 = arith.constant 0.000000e+00 : f32
    %64 = vector.broadcast %cst_25 : f32 to vector<128x128xf32>
    %65 = arith.cmpf oge, %63, %64 : vector<128x128xf32>
    %cst_26 = arith.constant 0.00999999977 : f32
    %66 = vector.broadcast %cst_26 : f32 to vector<128x128xf32>
    %67 = arith.mulf %66, %63 : vector<128x128xf32>
    %68 = arith.select %65, %63, %67 : vector<128x128xi1>, vector<128x128xf32>
    %c0_27 = arith.constant 0 : index
    %c0_28 = arith.constant 0 : index
    %c0_29 = arith.constant 0 : index
    %69 = vector.load %arg7[%c0_27, %c0_28, %c0_29] : memref<1x128x128xf32, #tpu.memory_space<vmem>>, vector<1x128x128xf32>
    %70 = vector.shape_cast %69 : vector<1x128x128xf32> to vector<128x128xf32>
    %71 = vector.shape_cast %68 : vector<128x128xf32> to vector<1x128x128xf32>
    tpu.vector_store %arg7[%c0_27, %c0_28, %c0_29], %71 {strides = array<i32>} : memref<1x128x128xf32, #tpu.memory_space<vmem>>, vector<1x128x128xf32>,
    %c0_30 = arith.constant 0 : index
    %c0_31 = arith.constant 0 : index
    %c0_32 = arith.constant 0 : index
    %72 = vector.load %arg8[%c0_30, %c0_31, %c0_32] : memref<1x128x128xf32, #tpu.memory_space<vmem>>, vector<1x128x128xf32>
    %73 = vector.shape_cast %72 : vector<1x128x128xf32> to vector<128x128xf32>
    %74 = vector.shape_cast %53 : vector<128x128xf32> to vector<1x128x128xf32>
    tpu.vector_store %arg8[%c0_30, %c0_31, %c0_32], %74 {strides = array<i32>} : memref<1x128x128xf32, #tpu.memory_space<vmem>>, vector<1x128x128xf32>,
    return
  }
  func.func @transform_0(%arg0: i32) -> (i32, i32, i32) {
    %c0_i32 = arith.constant 0 : i32
    %c0_i32_0 = arith.constant 0 : i32
    %c0_i32_1 = arith.constant 0 : i32
    return %arg0, %c0_i32, %c0_i32_0 : i32, i32, i32
  }
  func.func @transform_1(%arg0: i32) -> (i32, i32) {
    %c0_i32 = arith.constant 0 : i32
    %c0_i32_0 = arith.constant 0 : i32
    %c0_i32_1 = arith.constant 0 : i32
    return %c0_i32, %c0_i32_0 : i32, i32
  }
  func.func @transform_2(%arg0: i32) -> (i32, i32) {
    %c0_i32 = arith.constant 0 : i32
    %c0_i32_0 = arith.constant 0 : i32
    %c0_i32_1 = arith.constant 0 : i32
    return %c0_i32, %c0_i32_0 : i32, i32
  }
  func.func @transform_3(%arg0: i32) -> (i32, i32) {
    %c0_i32 = arith.constant 0 : i32
    %c0_i32_0 = arith.constant 0 : i32
    %c0_i32_1 = arith.constant 0 : i32
    return %c0_i32, %c0_i32_0 : i32, i32
  }
  func.func @transform_4(%arg0: i32) -> (i32, i32) {
    %c0_i32 = arith.constant 0 : i32
    %c0_i32_0 = arith.constant 0 : i32
    %c0_i32_1 = arith.constant 0 : i32
    return %c0_i32, %c0_i32_0 : i32, i32
  }
  func.func @transform_5(%arg0: i32) -> (i32, i32) {
    %c0_i32 = arith.constant 0 : i32
    %c0_i32_0 = arith.constant 0 : i32
    %c0_i32_1 = arith.constant 0 : i32
    return %c0_i32, %c0_i32_0 : i32, i32
  }
  func.func @transform_6(%arg0: i32) -> (i32, i32, i32) {
    %c0_i32 = arith.constant 0 : i32
    %c0_i32_0 = arith.constant 0 : i32
    %c0_i32_1 = arith.constant 0 : i32
    return %arg0, %c0_i32, %c0_i32_0 : i32, i32, i32
  }
  func.func @transform_7(%arg0: i32) -> (i32, i32, i32) {
    %c0_i32 = arith.constant 0 : i32
    %c0_i32_0 = arith.constant 0 : i32
    %c0_i32_1 = arith.constant 0 : i32
    return %arg0, %c0_i32, %c0_i32_0 : i32, i32, i32
  }
}

</mosaic_0001>

<llo_original>
// kernel: tpu_custom_call.1
$region0: #{tpu_custom_call.1}
  #allocation0 [shape = 'u32[]', space=smem, size = 0x4, offset = 0x4, fixed_abs, tag = 'smem constant byte address 0x4 - core index']
  #allocation1 [shape = 'u32[144,128]{1,0:T(1,128)}', space=vmem, size = 0x12000, scoped, tag = 'internal scratch']
  %s0 = inlined_call_operand.vmem [shape: f32[2,128,32], index: 0, kind: input, shape index: {}]
  %s1 = inlined_call_operand.vmem [shape: f32[1,32], index: 1, kind: input, shape index: {}]
  %s2 = inlined_call_operand.vmem [shape: f32[1,32], index: 2, kind: input, shape index: {}]
  %s3 = inlined_call_operand.vmem [shape: bf16[32,384], index: 3, kind: input, shape index: {}]
  %s4 = inlined_call_operand.vmem [shape: f32[1,384], index: 4, kind: input, shape index: {}]
  %s5 = inlined_call_operand.vmem [shape: bf16[128,128], index: 5, kind: input, shape index: {}]
  %s6 = inlined_call_operand.hbm [shape: f32[2,128,128], index: 6, kind: output, shape index: {0}]
  %s7 = inlined_call_operand.hbm [shape: f32[2,128,128], index: 7, kind: output, shape index: {1}]
  %8 = xla_tuple %s6, %s7
  %s9 = sld [smem:[#allocation0]]
  $region65: #{tpu_custom_call.1} parent=0
    _
  %s11 = ssub.s32 1, %s9
  %s12 = scalar_select 0, %s11, %s9
  $region1: #{tpu_custom_call.1} parent=0
    #allocation2 [shape = 'u8[131072]{0}', space=vmem, size = 0x20000, scoped, tag = 'output window, operand 0']
    #allocation3 [shape = 's32[2]{0}', space=sflag, size = 0x8, scoped, tag = 'scoped memory for tpu_custom_call.1']
    #allocation4 [shape = 'u8[131072]{0}', space=vmem, size = 0x20000, scoped, tag = 'output window, operand 1']
    #allocation5 [shape = 's32[2]{0}', space=sflag, size = 0x8, scoped, tag = 'scoped memory for tpu_custom_call.1']
    %13 = vsyncpa [#allocation3], 0
    %s14 = scalar_lea.sflag [#allocation3], 1
    %15 = vsyncpa %s14, 0
    %16 = vsyncpa [#allocation5], 0
    %s17 = scalar_lea.sflag [#allocation5], 1
    %18 = vsyncpa %s17, 0
    loop: start=0, step=1, limit=4
    $region2: #{tpu_custom_call.1} parent=1 // loop_pre_header
      _
    $region3: #{tpu_custom_call.1} parent=1 // loop_header
      %s20 = sphi 0, %s24
      %p21 = scmp.ge.s32.totalorder %s20, 4
      %s30 = sphi 0, %s32
      %s33 = sphi 0, %s30
      %s34 = sphi 0, %s33
      %s50 = sphi 0, %s34
      %s54 = sphi 0, %s54
      %s56 = sphi 0, %s54
      %s57 = sphi 0, %s56
      %s71 = sphi 0, %s57
      %s75 = sphi 0, %s75
      %s77 = sphi 0, %s75
      %s78 = sphi 0, %s77
      %s92 = sphi 0, %s78
      %s96 = sphi 0, %s96
      %s98 = sphi 0, %s96
      %s99 = sphi 0, %s98
      %s113 = sphi 0, %s99
      %s117 = sphi 0, %s117
      %s119 = sphi 0, %s117
      %s120 = sphi 0, %s119
      %s134 = sphi 0, %s120
      %s138 = sphi 0, %s138
      %s140 = sphi 0, %s138
      %s141 = sphi 0, %s140
      %s155 = sphi 0, %s141
      %s161 = sphi 0, %s163
      %s164 = sphi 0, %s161
      %s165 = sphi 0, %s164
      %s181 = sphi 0, %s165
      %s187 = sphi 0, %s189
      %s190 = sphi 0, %s187
      %s191 = sphi 0, %s190
      %s207 = sphi 0, %s191
    $region4: #{tpu_custom_call.1} parent=1 // loop_header_branch
      %23 = sbr.rel (%p21) target = $region8
    $region5: #{tpu_custom_call.1} parent=1 // loop_body
      %s25 = ssub.s32 %s20, 1
      %s26 = ssub.s32 %s20, 2
      %s27 = sadd.s32 %s20, 1
      %s28 = ssub.s32 %s20, %s27
      %p29 = scmp.eq.s32.totalorder %s28, 0
      %s31 = sadd.s32 %s30, 1
      %s32 = scalar_select %p29, %s30, %s31
      %p35 = pneg %p29
      %p36 = scmp.eq.s32.totalorder %s20, 1
      %p37 = por %p35, %p36
      %p38 = scmp.ne.s32.totalorder %s30, %s33
      %p39 = scmp.eq.s32.totalorder %s20, 0
      %p40 = por %p38, %p39
      %p41 = scmp.ne.s32.totalorder %s30, %s33
      %p42 = scmp.eq.s32.totalorder %s25, 1
      %p43 = por %p41, %p42
      %p44 = scmp.ne.s32.totalorder %s33, %s34
      %p45 = scmp.eq.s32.totalorder %s25, 0
      %p46 = por %p44, %p45
      %p47 = scmp.ne.s32.totalorder %s33, %s34
      %p48 = scmp.eq.s32.totalorder %s26, 1
      %p49 = por %p47, %p48
      %p51 = scmp.ne.s32.totalorder %s34, %s50
      %p52 = scmp.eq.s32.totalorder %s26, 0
      %p53 = por %p51, %p52
      %s55 = sadd.s32 %s54, 1
      %p58 = scmp.eq.s32.totalorder %s20, 1
      %p59 = scmp.ne.s32.totalorder %s54, %s56
      %p60 = scmp.eq.s32.totalorder %s20, 0
      %p61 = por %p59, %p60
      %p62 = scmp.ne.s32.totalorder %s54, %s56
      %p63 = scmp.eq.s32.totalorder %s25, 1
      %p64 = por %p62, %p63
      %p65 = scmp.ne.s32.totalorder %s56, %s57
      %p66 = scmp.eq.s32.totalorder %s25, 0
      %p67 = por %p65, %p66
      %p68 = scmp.ne.s32.totalorder %s56, %s57
      %p69 = scmp.eq.s32.totalorder %s26, 1
      %p70 = por %p68, %p69
      %p72 = scmp.ne.s32.totalorder %s57, %s71
      %p73 = scmp.eq.s32.totalorder %s26, 0
      %p74 = por %p72, %p73
      %s76 = sadd.s32 %s75, 1
      %p79 = scmp.eq.s32.totalorder %s20, 1
      %p80 = scmp.ne.s32.totalorder %s75, %s77
      %p81 = scmp.eq.s32.totalorder %s20, 0
      %p82 = por %p80, %p81
      %p83 = scmp.ne.s32.totalorder %s75, %s77
      %p84 = scmp.eq.s32.totalorder %s25, 1
      %p85 = por %p83, %p84
      %p86 = scmp.ne.s32.totalorder %s77, %s78
      %p87 = scmp.eq.s32.totalorder %s25, 0
      %p88 = por %p86, %p87
      %p89 = scmp.ne.s32.totalorder %s77, %s78
      %p90 = scmp.eq.s32.totalorder %s26, 1
      %p91 = por %p89, %p90
      %p93 = scmp.ne.s32.totalorder %s78, %s92
      %p94 = scmp.eq.s32.totalorder %s26, 0
      %p95 = por %p93, %p94
      %s97 = sadd.s32 %s96, 1
      %p100 = scmp.eq.s32.totalorder %s20, 1
      %p101 = scmp.ne.s32.totalorder %s96, %s98
      %p102 = scmp.eq.s32.totalorder %s20, 0
      %p103 = por %p101, %p102
      %p104 = scmp.ne.s32.totalorder %s96, %s98
      %p105 = scmp.eq.s32.totalorder %s25, 1
      %p106 = por %p104, %p105
      %p107 = scmp.ne.s32.totalorder %s98, %s99
      %p108 = scmp.eq.s32.totalorder %s25, 0
      %p109 = por %p107, %p108
      %p110 = scmp.ne.s32.totalorder %s98, %s99
      %p111 = scmp.eq.s32.totalorder %s26, 1
      %p112 = por %p110, %p111
      %p114 = scmp.ne.s32.totalorder %s99, %s113
      %p115 = scmp.eq.s32.totalorder %s26, 0
      %p116 = por %p114, %p115
      %s118 = sadd.s32 %s117, 1
      %p121 = scmp.eq.s32.totalorder %s20, 1
      %p122 = scmp.ne.s32.totalorder %s117, %s119
      %p123 = scmp.eq.s32.totalorder %s20, 0
      %p124 = por %p122, %p123
      %p125 = scmp.ne.s32.totalorder %s117, %s119
      %p126 = scmp.eq.s32.totalorder %s25, 1
      %p127 = por %p125, %p126
      %p128 = scmp.ne.s32.totalorder %s119, %s120
      %p129 = scmp.eq.s32.totalorder %s25, 0
      %p130 = por %p128, %p129
      %p131 = scmp.ne.s32.totalorder %s119, %s120
      %p132 = scmp.eq.s32.totalorder %s26, 1
      %p133 = por %p131, %p132
      %p135 = scmp.ne.s32.totalorder %s120, %s134
      %p136 = scmp.eq.s32.totalorder %s26, 0
      %p137 = por %p135, %p136
      %s139 = sadd.s32 %s138, 1
      %p142 = scmp.eq.s32.totalorder %s20, 1
      %p143 = scmp.ne.s32.totalorder %s138, %s140
      %p144 = scmp.eq.s32.totalorder %s20, 0
      %p145 = por %p143, %p144
      %p146 = scmp.ne.s32.totalorder %s138, %s140
      %p147 = scmp.eq.s32.totalorder %s25, 1
      %p148 = por %p146, %p147
      %p149 = scmp.ne.s32.totalorder %s140, %s141
      %p150 = scmp.eq.s32.totalorder %s25, 0
      %p151 = por %p149, %p150
      %p152 = scmp.ne.s32.totalorder %s140, %s141
      %p153 = scmp.eq.s32.totalorder %s26, 1
      %p154 = por %p152, %p153
      %p156 = scmp.ne.s32.totalorder %s141, %s155
      %p157 = scmp.eq.s32.totalorder %s26, 0
      %p158 = por %p156, %p157
      %s159 = ssub.s32 %s20, %s27
      %p160 = scmp.eq.s32.totalorder %s159, 0
      %s162 = sadd.s32 %s161, 1
      %s163 = scalar_select %p160, %s161, %s162
      %p166 = pneg %p160
      %p167 = scmp.eq.s32.totalorder %s20, 1
      %p168 = por %p166, %p167
      %p169 = scmp.ne.s32.totalorder %s161, %s164
      %p170 = scmp.eq.s32.totalorder %s20, 0
      %p171 = por %p169, %p170
      %p172 = scmp.ne.s32.totalorder %s161, %s164
      %p173 = scmp.eq.s32.totalorder %s25, 1
      %p174 = por %p172, %p173
      %p175 = scmp.ne.s32.totalorder %s164, %s165
      %p176 = scmp.eq.s32.totalorder %s25, 0
      %p177 = por %p175, %p176
      %p178 = scmp.ne.s32.totalorder %s164, %s165
      %p179 = scmp.eq.s32.totalorder %s26, 1
      %p180 = por %p178, %p179
      %p182 = scmp.ne.s32.totalorder %s165, %s181
      %p183 = scmp.eq.s32.totalorder %s26, 0
      %p184 = por %p182, %p183
      %s185 = ssub.s32 %s20, %s27
      %p186 = scmp.eq.s32.totalorder %s185, 0
      %s188 = sadd.s32 %s187, 1
      %s189 = scalar_select %p186, %s187, %s188
      %p192 = pneg %p186
      %p193 = scmp.eq.s32.totalorder %s20, 1
      %p194 = por %p192, %p193
      %p195 = scmp.ne.s32.totalorder %s187, %s190
      %p196 = scmp.eq.s32.totalorder %s20, 0
      %p197 = por %p195, %p196
      %p198 = scmp.ne.s32.totalorder %s187, %s190
      %p199 = scmp.eq.s32.totalorder %s25, 1
      %p200 = por %p198, %p199
      %p201 = scmp.ne.s32.totalorder %s190, %s191
      %p202 = scmp.eq.s32.totalorder %s25, 0
      %p203 = por %p201, %p202
      %p204 = scmp.ne.s32.totalorder %s190, %s191
      %p205 = scmp.eq.s32.totalorder %s26, 1
      %p206 = por %p204, %p205
      %p208 = scmp.ne.s32.totalorder %s191, %s207
      %p209 = scmp.eq.s32.totalorder %s26, 0
      %p210 = por %p208, %p209
      %p211 = scmp.le.s32.totalorder 1, %s20
      %p212 = scmp.lt.s32.totalorder %s20, 3
      %p213 = pnand %p211, %p212
      %p214 = pneg %p213
      // Predicated region
      $region9: #{tpu_custom_call.1} parent=5 // pred_check
        _
      $region10: #{tpu_custom_call.1} parent=5 // pred_check_branch
        %216 = sbr.rel (%p213) target = $region12
      $region11: #{tpu_custom_call.1} parent=5 // pred_region
        %s217 = ssub.s32 %s20, 1
        // Predicated region
        $region13: #{tpu_custom_call.1} parent=11 // pred_check
          %p218 = pneg %p67
        $region14: #{tpu_custom_call.1} parent=11 // pred_check_branch
          %220 = sbr.rel (%p218) target = $region16
        $region15: #{tpu_custom_call.1} parent=11 // pred_region
          _
        $region16: #{tpu_custom_call.1} parent=11 // pred_fallthru
          _
        // Predicated region
        $region17: #{tpu_custom_call.1} parent=11 // pred_check
          %p221 = pneg %p88
        $region18: #{tpu_custom_call.1} parent=11 // pred_check_branch
          %223 = sbr.rel (%p221) target = $region20
        $region19: #{tpu_custom_call.1} parent=11 // pred_region
          _
        $region20: #{tpu_custom_call.1} parent=11 // pred_fallthru
          _
        // Predicated region
        $region21: #{tpu_custom_call.1} parent=11 // pred_check
          %p224 = pneg %p109
        $region22: #{tpu_custom_call.1} parent=11 // pred_check_branch
          %226 = sbr.rel (%p224) target = $region24
        $region23: #{tpu_custom_call.1} parent=11 // pred_region
          _
        $region24: #{tpu_custom_call.1} parent=11 // pred_fallthru
          _
        // Predicated region
        $region25: #{tpu_custom_call.1} parent=11 // pred_check
          %p227 = pneg %p130
        $region26: #{tpu_custom_call.1} parent=11 // pred_check_branch
          %229 = sbr.rel (%p227) target = $region28
        $region27: #{tpu_custom_call.1} parent=11 // pred_region
          _
        $region28: #{tpu_custom_call.1} parent=11 // pred_fallthru
          _
        // Predicated region
        $region29: #{tpu_custom_call.1} parent=11 // pred_check
          %p230 = pneg %p151
        $region30: #{tpu_custom_call.1} parent=11 // pred_check_branch
          %232 = sbr.rel (%p230) target = $region32
        $region31: #{tpu_custom_call.1} parent=11 // pred_region
          _
        $region32: #{tpu_custom_call.1} parent=11 // pred_fallthru
          _
      $region12: #{tpu_custom_call.1} parent=5 // pred_fallthru
        _
      %p233 = scmp.lt.s32.totalorder %s20, 2
      // Predicated region
      $region33: #{tpu_custom_call.1} parent=5 // pred_check
        %p234 = pneg %p233
      $region34: #{tpu_custom_call.1} parent=5 // pred_check_branch
        %236 = sbr.rel (%p234) target = $region36
      $region35: #{tpu_custom_call.1} parent=5 // pred_region
        // Predicated region
        $region37: #{tpu_custom_call.1} parent=35 // pred_check
          %p237 = pneg %p40
        $region38: #{tpu_custom_call.1} parent=35 // pred_check_branch
          %239 = sbr.rel (%p237) target = $region40
        $region39: #{tpu_custom_call.1} parent=35 // pred_region
          %p240 = scmp.lt.s32.totalorder %s20, 1
          %s241 = scalar_select %p240, %s20, 1
          %s242 = smul.addr %s241, 16
          %s243 = smul.addr %s242, 8
          %s244 = scalar_lea.vmem %s0, %s243
        $region40: #{tpu_custom_call.1} parent=35 // pred_fallthru
          _
      $region36: #{tpu_custom_call.1} parent=5 // pred_fallthru
        _
      %p245 = scmp.le.s32.totalorder 1, %s20
      %p246 = scmp.lt.s32.totalorder %s20, 3
      %p247 = pnand %p245, %p246
      %p248 = pneg %p247
      // Predicated region
      $region41: #{tpu_custom_call.1} parent=5 // pred_check
        _
      $region42: #{tpu_custom_call.1} parent=5 // pred_check_branch
        %250 = sbr.rel (%p247) target = $region44
      $region43: #{tpu_custom_call.1} parent=5 // pred_region
        %s251 = ssub.s32 %s20, 1
        %p252 = scmp.lt.s32.totalorder %s25, 1
        %s253 = scalar_select %p252, %s25, 1
        %s254 = smul.addr %s253, 16
        %s255 = smul.addr %s254, 8
        %s256 = scalar_lea.vmem %s0, %s255
        %p257 = pneg %p46
        %p258 = pneg %p43
        %p259 = pneg %p67
        %p260 = pneg %p64
        %p261 = pneg %p88
        %p262 = pneg %p85
        %p263 = pneg %p109
        %p264 = pneg %p106
        %p265 = pneg %p130
        %p266 = pneg %p127
        %p267 = pneg %p151
        %p268 = pneg %p148
        %p269 = pneg %p177
        %p270 = pneg %p174
        %s271 = sand.u32 %s164, 1
        %s272 = scalar_lea.sflag [#allocation3], %s271
        %s273 = sand.u32 %s164, 1
        %s274 = smul.addr %s273, 128
        %s275 = scalar_lea.vmem [#allocation2], %s274
        %p276 = pneg %p203
        %p277 = pneg %p200
        %s278 = sand.u32 %s190, 1
        %s279 = scalar_lea.sflag [#allocation5], %s278
        %s280 = sand.u32 %s190, 1
        %s281 = smul.addr %s280, 128
        %s282 = scalar_lea.vmem [#allocation4], %s281
        %p283 = scmp.lt.s32.totalorder %s25, 1
        %s284 = scalar_select %p283, %s25, 1
        %s285 = smul.addr %s284, 16
        %s286 = smul.addr %s285, 8
        %s287 = scalar_lea.vmem %s0, %s286
        %v289 = vld [vmem:[%s287] sm:$0xff]
        %v290 = vld [vmem:[%s287 + $0x8] sm:$0xff]
        %v291 = vld [vmem:[%s287 + $0x10] sm:$0xff]
        %v292 = vld [vmem:[%s287 + $0x18] sm:$0xff]
        %v293 = vld [vmem:[%s287 + $0x20] sm:$0xff]
        %v294 = vld [vmem:[%s287 + $0x28] sm:$0xff]
        %v295 = vld [vmem:[%s287 + $0x30] sm:$0xff]
        %v296 = vld [vmem:[%s287 + $0x38] sm:$0xff]
        %v297 = vld [vmem:[%s287 + $0x40] sm:$0xff]
        %v298 = vld [vmem:[%s287 + $0x48] sm:$0xff]
        %v299 = vld [vmem:[%s287 + $0x50] sm:$0xff]
        %v300 = vld [vmem:[%s287 + $0x58] sm:$0xff]
        %v301 = vld [vmem:[%s287 + $0x60] sm:$0xff]
        %v302 = vld [vmem:[%s287 + $0x68] sm:$0xff]
        %v303 = vld [vmem:[%s287 + $0x70] sm:$0xff]
        %v304 = vld [vmem:[%s287 + $0x78] sm:$0xff]
        %vm305 = vcmask 261120
        %v306 = vsel %vm305, %v289, 0.0
        %v307 = vsel %vm305, %v290, 0.0
        %v308 = vadd.f32 %v306, %v307
        %v309 = vsel %vm305, %v291, 0.0
        %v310 = vadd.f32 %v308, %v309
        %v311 = vsel %vm305, %v292, 0.0
        %v312 = vadd.f32 %v310, %v311
        %v313 = vsel %vm305, %v293, 0.0
        %v314 = vadd.f32 %v312, %v313
        %v315 = vsel %vm305, %v294, 0.0
        %v316 = vadd.f32 %v314, %v315
        %v317 = vsel %vm305, %v295, 0.0
        %v318 = vadd.f32 %v316, %v317
        %v319 = vsel %vm305, %v296, 0.0
        %v320 = vadd.f32 %v318, %v319
        %v321 = vsel %vm305, %v297, 0.0
        %v322 = vadd.f32 %v320, %v321
        %v323 = vsel %vm305, %v298, 0.0
        %v324 = vadd.f32 %v322, %v323
        %v325 = vsel %vm305, %v299, 0.0
        %v326 = vadd.f32 %v324, %v325
        %v327 = vsel %vm305, %v300, 0.0
        %v328 = vadd.f32 %v326, %v327
        %v329 = vsel %vm305, %v301, 0.0
        %v330 = vadd.f32 %v328, %v329
        %v331 = vsel %vm305, %v302, 0.0
        %v332 = vadd.f32 %v330, %v331
        %v333 = vsel %vm305, %v303, 0.0
        %v334 = vadd.f32 %v332, %v333
        %v335 = vsel %vm305, %v304, 0.0
        %v336 = vadd.f32 %v334, %v335
        %v337 = vrot.slane %v336, 4
        %v338 = vadd.f32 %v336, %v337
        %v339 = vrot.slane %v338, 2
        %v340 = vadd.f32 %v338, %v339
        %v341 = vrot.slane %v340, 1
        %v342 = vadd.f32 %v340, %v341
        %v343 = vmul.f32 %v342, 0.015625
        %v344 = vmul.f32 %v289, %v289
        %v345 = vmul.f32 %v290, %v290
        %v346 = vmul.f32 %v291, %v291
        %v347 = vmul.f32 %v292, %v292
        %v348 = vmul.f32 %v293, %v293
        %v349 = vmul.f32 %v294, %v294
        %v350 = vmul.f32 %v295, %v295
        %v351 = vmul.f32 %v296, %v296
        %v352 = vmul.f32 %v297, %v297
        %v353 = vmul.f32 %v298, %v298
        %v354 = vmul.f32 %v299, %v299
        %v355 = vmul.f32 %v300, %v300
        %v356 = vmul.f32 %v301, %v301
        %v357 = vmul.f32 %v302, %v302
        %v358 = vmul.f32 %v303, %v303
        %v359 = vmul.f32 %v304, %v304
        %v360 = vsel %vm305, %v344, 0.0
        %v361 = vsel %vm305, %v345, 0.0
        %v362 = vadd.f32 %v360, %v361
        %v363 = vsel %vm305, %v346, 0.0
        %v364 = vadd.f32 %v362, %v363
        %v365 = vsel %vm305, %v347, 0.0
        %v366 = vadd.f32 %v364, %v365
        %v367 = vsel %vm305, %v348, 0.0
        %v368 = vadd.f32 %v366, %v367
        %v369 = vsel %vm305, %v349, 0.0
        %v370 = vadd.f32 %v368, %v369
        %v371 = vsel %vm305, %v350, 0.0
        %v372 = vadd.f32 %v370, %v371
        %v373 = vsel %vm305, %v351, 0.0
        %v374 = vadd.f32 %v372, %v373
        %v375 = vsel %vm305, %v352, 0.0
        %v376 = vadd.f32 %v374, %v375
        %v377 = vsel %vm305, %v353, 0.0
        %v378 = vadd.f32 %v376, %v377
        %v379 = vsel %vm305, %v354, 0.0
        %v380 = vadd.f32 %v378, %v379
        %v381 = vsel %vm305, %v355, 0.0
        %v382 = vadd.f32 %v380, %v381
        %v383 = vsel %vm305, %v356, 0.0
        %v384 = vadd.f32 %v382, %v383
        %v385 = vsel %vm305, %v357, 0.0
        %v386 = vadd.f32 %v384, %v385
        %v387 = vsel %vm305, %v358, 0.0
        %v388 = vadd.f32 %v386, %v387
        %v389 = vsel %vm305, %v359, 0.0
        %v390 = vadd.f32 %v388, %v389
        %v391 = vrot.slane %v390, 4
        %v392 = vadd.f32 %v390, %v391
        %v393 = vrot.slane %v392, 2
        %v394 = vadd.f32 %v392, %v393
        %v395 = vrot.slane %v394, 1
        %v396 = vadd.f32 %v394, %v395
        %v397 = vmul.f32 %v396, 0.015625
        %v398 = vmul.f32 %v343, %v343
        %v399 = vsub.f32 %v397, %v398
        %v400 = vsub.f32 %v289, %v343
        %v401 = vsub.f32 %v290, %v343
        %v402 = vsub.f32 %v291, %v343
        %v403 = vsub.f32 %v292, %v343
        %v404 = vsub.f32 %v293, %v343
        %v405 = vsub.f32 %v294, %v343
        %v406 = vsub.f32 %v295, %v343
        %v407 = vsub.f32 %v296, %v343
        %v408 = vsub.f32 %v297, %v343
        %v409 = vsub.f32 %v298, %v343
        %v410 = vsub.f32 %v299, %v343
        %v411 = vsub.f32 %v300, %v343
        %v412 = vsub.f32 %v301, %v343
        %v413 = vsub.f32 %v302, %v343
        %v414 = vsub.f32 %v303, %v343
        %v415 = vsub.f32 %v304, %v343
        %v416 = vadd.f32 %v399, 1e-05
        %v417 = vrsqrt.pop %v416
        %v418 = vmul.f32 %v400, %v417
        %v419 = vmul.f32 %v401, %v417
        %v420 = vmul.f32 %v402, %v417
        %v421 = vmul.f32 %v403, %v417
        %v422 = vmul.f32 %v404, %v417
        %v423 = vmul.f32 %v405, %v417
        %v424 = vmul.f32 %v406, %v417
        %v425 = vmul.f32 %v407, %v417
        %v426 = vmul.f32 %v408, %v417
        %v427 = vmul.f32 %v409, %v417
        %v428 = vmul.f32 %v410, %v417
        %v429 = vmul.f32 %v411, %v417
        %v430 = vmul.f32 %v412, %v417
        %v431 = vmul.f32 %v413, %v417
        %v432 = vmul.f32 %v414, %v417
        %v433 = vmul.f32 %v415, %v417
        %v434 = vld [vmem:[%s1] sm:$0x1]
        %v436 = vlaneseq
        %v437 = vshrl.u32 %v436, 7
        %v438 = vsub.s32 0, %v437
        %v439 = vrot.slane %v434, %v438
        %v441 = vmul.f32 %v418, %v439
        %v442 = vmul.f32 %v419, %v439
        %v443 = vmul.f32 %v420, %v439
        %v444 = vmul.f32 %v421, %v439
        %v445 = vmul.f32 %v422, %v439
        %v446 = vmul.f32 %v423, %v439
        %v447 = vmul.f32 %v424, %v439
        %v448 = vmul.f32 %v425, %v439
        %v449 = vmul.f32 %v426, %v439
        %v450 = vmul.f32 %v427, %v439
        %v451 = vmul.f32 %v428, %v439
        %v452 = vmul.f32 %v429, %v439
        %v453 = vmul.f32 %v430, %v439
        %v454 = vmul.f32 %v431, %v439
        %v455 = vmul.f32 %v432, %v439
        %v456 = vmul.f32 %v433, %v439
        %v457 = vld [vmem:[%s2] sm:$0x1]
        %v459 = vlaneseq
        %v460 = vshrl.u32 %v459, 7
        %v461 = vsub.s32 0, %v460
        %v462 = vrot.slane %v457, %v461
        %v464 = vadd.f32 %v441, %v462
        %v465 = vadd.f32 %v442, %v462
        %v466 = vadd.f32 %v443, %v462
        %v467 = vadd.f32 %v444, %v462
        %v468 = vadd.f32 %v445, %v462
        %v469 = vadd.f32 %v446, %v462
        %v470 = vadd.f32 %v447, %v462
        %v471 = vadd.f32 %v448, %v462
        %v472 = vadd.f32 %v449, %v462
        %v473 = vadd.f32 %v450, %v462
        %v474 = vadd.f32 %v451, %v462
        %v475 = vadd.f32 %v452, %v462
        %v476 = vadd.f32 %v453, %v462
        %v477 = vadd.f32 %v454, %v462
        %v478 = vadd.f32 %v455, %v462
        %v479 = vadd.f32 %v456, %v462
        %v480 = vpack.c.bf16 %v465, %v464
        %v481 = vpack.c.bf16 %v467, %v466
        %v482 = vpack.c.bf16 %v469, %v468
        %v483 = vpack.c.bf16 %v471, %v470
        %v484 = vpack.c.bf16 %v473, %v472
        %v485 = vpack.c.bf16 %v475, %v474
        %v486 = vpack.c.bf16 %v477, %v476
        %v487 = vpack.c.bf16 %v479, %v478
        %v488 = vld [vmem:[%s3] sm:$0xff]
        %v489 = vld [vmem:[%s3 + $0x8] sm:$0xf]
        %v490 = vld [vmem:[%s3 + $0xc] sm:$0xff]
        %v491 = vld [vmem:[%s3 + $0x14] sm:$0xf]
        %v492 = vld [vmem:[%s3 + $0x18] sm:$0xff]
        %v493 = vld [vmem:[%s3 + $0x20] sm:$0xf]
        %v494 = vld [vmem:[%s3 + $0x24] sm:$0xff]
        %v495 = vld [vmem:[%s3 + $0x2c] sm:$0xf]
        %v496 = vld [vmem:[%s4] sm:$0x7]
        %v498 = vlaneseq
        %v499 = vshrl.u32 %v498, 7
        %v500 = vsub.s32 0, %v499
        %v501 = vrot.slane %v496, %v500
        %v502 = vlaneseq
        %v503 = vshrl.u32 %v502, 7
        %v504 = vsub.s32 1, %v503
        %v505 = vrot.slane %v496, %v504
        %v506 = vlaneseq
        %v507 = vshrl.u32 %v506, 7
        %v508 = vsub.s32 2, %v507
        %v509 = vrot.slane %v496, %v508
        %v521 = vunpack.c.l.b16 %v488
        %v522 = vunpack.c.h.b16 %v488
        %v523 = vunpack.c.l.b16 %v489
        %v524 = vunpack.c.l.b16 %v490
        %v525 = vunpack.c.h.b16 %v490
        %v526 = vunpack.c.l.b16 %v491
        %v527 = vunpack.c.l.b16 %v492
        %v528 = vunpack.c.h.b16 %v492
        %v529 = vunpack.c.l.b16 %v493
        %v530 = vunpack.c.l.b16 %v494
        %v531 = vunpack.c.h.b16 %v494
        %v532 = vunpack.c.l.b16 %v495
        %v533 = vpack.c.b16 %v524, %v521
        %v534 = vpack.c.b16 %v525, %v522
        %v535 = vpack.c.b16 %v526, %v523
        %v536 = vpack.c.b16 %v530, %v527
        %v537 = vpack.c.b16 %v531, %v528
        %v538 = vpack.c.b16 %v532, %v529
        %v546 = vsel %vm305, %v480, 0
        %v549 = vsel %vm305, %v481, 0
        %v552 = vsel %vm305, %v482, 0
        %v555 = vsel %vm305, %v483, 0
        %v558 = vsel %vm305, %v484, 0
        %v561 = vsel %vm305, %v485, 0
        %v564 = vsel %vm305, %v486, 0
        %v567 = vsel %vm305, %v487, 0
        %569 = vmatprep.subr.bf16.mxu0 %v534
        %570 = vmatpush1.bf16.msra.mxu0 %v533
        %571 = vmatprep.subr.bf16.mxu0 %v537
        %572 = vmatpush1.bf16.msra.mxu0 %v536
        %573 = vmatprep.subr.bf16.mxu0 0
        %574 = vmatpush1.bf16.msra.mxu0 0
        %575 = vmatprep.subr.bf16.mxu0 0
        %576 = vmatpush1.bf16.msra.mxu0 0
        %577 = vmatprep.subr.bf16.mxu0 0
        %578 = vmatpush1.bf16.msra.mxu0 0
        %579 = vmatprep.subr.bf16.mxu0 0
        %580 = vmatpush1.bf16.msra.mxu0 0
        %581 = vmatprep.subr.bf16.mxu0 0
        %582 = vmatpush1.bf16.msra.mxu0 0
        %583 = vmatprep.subr.bf16.mxu0 0
        %584 = vmatpush1.bf16.msra.mxu0 0
        %585 = vmatprep.subr.bf16.mxu0 0
        %586 = vmatpush1.bf16.msra.mxu0 0
        %587 = vmatprep.subr.bf16.mxu0 0
        %588 = vmatpush1.bf16.msra.mxu0 0
        %589 = vmatprep.subr.bf16.mxu0 0
        %590 = vmatpush1.bf16.msra.mxu0 0
        %591 = vmatprep.subr.bf16.mxu0 0
        %592 = vmatpush1.bf16.msra.mxu0 0
        %593 = vmatprep.subr.bf16.mxu0 0
        %594 = vmatpush1.bf16.msra.mxu0 0
        %595 = vmatprep.subr.bf16.mxu0 0
        %596 = vmatpush1.bf16.msra.mxu0 0
        %597 = vmatprep.subr.bf16.mxu0 0
        %598 = vmatpush1.bf16.msra.mxu0 0
        %599 = vmatprep.subr.bf16.mxu0 0
        %600 = vmatpush1.bf16.msra.mxu0 0
        %601 = vmatprep.mubr.bf16.mxu0 0
        %602 = vmatmul.mubr.bf16.gmra.mrb[0].mxu0 %v546
        %v603 = vpop.f32.mrb[0].mxu0
        %v604 = vadd.f32 %v501, %v603
        %v605 = vpop.f32.mrb[0].mxu0
        %v606 = vadd.f32 %v505, %v605
        %v607 = vpop.f32.mrb[0].mxu0
        %v608 = vadd.f32 %v501, %v607
        %v609 = vpop.f32.mrb[0].mxu0
        %v610 = vadd.f32 %v505, %v609
        %611 = vmatprep.mubr.bf16.mxu0 0
        %612 = vmatmul.mubr.bf16.gmra.mrb[0].mxu0 %v549
        %v613 = vpop.f32.mrb[0].mxu0
        %v614 = vadd.f32 %v501, %v613
        %v615 = vpop.f32.mrb[0].mxu0
        %v616 = vadd.f32 %v505, %v615
        %v617 = vpop.f32.mrb[0].mxu0
        %v618 = vadd.f32 %v501, %v617
        %v619 = vpop.f32.mrb[0].mxu0
        %v620 = vadd.f32 %v505, %v619
        %621 = vmatprep.mubr.bf16.mxu0 0
        %622 = vmatmul.mubr.bf16.gmra.mrb[0].mxu0 %v552
        %v623 = vpop.f32.mrb[0].mxu0
        %v624 = vadd.f32 %v501, %v623
        %v625 = vpop.f32.mrb[0].mxu0
        %v626 = vadd.f32 %v505, %v625
        %v627 = vpop.f32.mrb[0].mxu0
        %v628 = vadd.f32 %v501, %v627
        %v629 = vpop.f32.mrb[0].mxu0
        %v630 = vadd.f32 %v505, %v629
        %631 = vmatprep.mubr.bf16.mxu0 0
        %632 = vmatmul.mubr.bf16.gmra.mrb[0].mxu0 %v555
        %v633 = vpop.f32.mrb[0].mxu0
        %v634 = vadd.f32 %v501, %v633
        %v635 = vpop.f32.mrb[0].mxu0
        %v636 = vadd.f32 %v505, %v635
        %v637 = vpop.f32.mrb[0].mxu0
        %v638 = vadd.f32 %v501, %v637
        %v639 = vpop.f32.mrb[0].mxu0
        %v640 = vadd.f32 %v505, %v639
        %641 = vmatprep.mubr.bf16.mxu0 0
        %642 = vmatmul.mubr.bf16.gmra.mrb[0].mxu0 %v558
        %v643 = vpop.f32.mrb[0].mxu0
        %v644 = vadd.f32 %v501, %v643
        %v645 = vpop.f32.mrb[0].mxu0
        %v646 = vadd.f32 %v505, %v645
        %v647 = vpop.f32.mrb[0].mxu0
        %v648 = vadd.f32 %v501, %v647
        %v649 = vpop.f32.mrb[0].mxu0
        %v650 = vadd.f32 %v505, %v649
        %651 = vmatprep.mubr.bf16.mxu0 0
        %652 = vmatmul.mubr.bf16.gmra.mrb[0].mxu0 %v561
        %v653 = vpop.f32.mrb[0].mxu0
        %v654 = vadd.f32 %v501, %v653
        %v655 = vpop.f32.mrb[0].mxu0
        %v656 = vadd.f32 %v505, %v655
        %v657 = vpop.f32.mrb[0].mxu0
        %v658 = vadd.f32 %v501, %v657
        %v659 = vpop.f32.mrb[0].mxu0
        %v660 = vadd.f32 %v505, %v659
        %661 = vmatprep.mubr.bf16.mxu0 0
        %662 = vmatmul.mubr.bf16.gmra.mrb[0].mxu0 %v564
        %v663 = vpop.f32.mrb[0].mxu0
        %v664 = vadd.f32 %v501, %v663
        %v665 = vpop.f32.mrb[0].mxu0
        %v666 = vadd.f32 %v505, %v665
        %v667 = vpop.f32.mrb[0].mxu0
        %v668 = vadd.f32 %v501, %v667
        %v669 = vpop.f32.mrb[0].mxu0
        %v670 = vadd.f32 %v505, %v669
        %671 = vmatprep.mubr.bf16.mxu0 0
        %672 = vmatmul.mubr.bf16.gmra.mrb[0].mxu0 %v567
        %v673 = vpop.f32.mrb[0].mxu0
        %v674 = vadd.f32 %v501, %v673
        %v675 = vpop.f32.mrb[0].mxu0
        %v676 = vadd.f32 %v505, %v675
        %v677 = vpop.f32.mrb[0].mxu0
        %v678 = vadd.f32 %v501, %v677
        %v679 = vpop.f32.mrb[0].mxu0
        %v680 = vadd.f32 %v505, %v679
        %681 = vdwg.mxu0
        %682 = vmatprep.subr.bf16.mxu0 0
        %683 = vmatpush1.bf16.msra.mxu0 %v535
        %684 = vmatprep.subr.bf16.mxu0 0
        %685 = vmatpush1.bf16.msra.mxu0 %v538
        %686 = vmatprep.subr.bf16.mxu0 0
        %687 = vmatpush1.bf16.msra.mxu0 0
        %688 = vmatprep.subr.bf16.mxu0 0
        %689 = vmatpush1.bf16.msra.mxu0 0
        %690 = vmatprep.subr.bf16.mxu0 0
        %691 = vmatpush1.bf16.msra.mxu0 0
        %692 = vmatprep.subr.bf16.mxu0 0
        %693 = vmatpush1.bf16.msra.mxu0 0
        %694 = vmatprep.subr.bf16.mxu0 0
        %695 = vmatpush1.bf16.msra.mxu0 0
        %696 = vmatprep.subr.bf16.mxu0 0
        %697 = vmatpush1.bf16.msra.mxu0 0
        %698 = vmatprep.subr.bf16.mxu0 0
        %699 = vmatpush1.bf16.msra.mxu0 0
        %700 = vmatprep.subr.bf16.mxu0 0
        %701 = vmatpush1.bf16.msra.mxu0 0
        %702 = vmatprep.subr.bf16.mxu0 0
        %703 = vmatpush1.bf16.msra.mxu0 0
        %704 = vmatprep.subr.bf16.mxu0 0
        %705 = vmatpush1.bf16.msra.mxu0 0
        %706 = vmatprep.subr.bf16.mxu0 0
        %707 = vmatpush1.bf16.msra.mxu0 0
        %708 = vmatprep.subr.bf16.mxu0 0
        %709 = vmatpush1.bf16.msra.mxu0 0
        %710 = vmatprep.subr.bf16.mxu0 0
        %711 = vmatpush1.bf16.msra.mxu0 0
        %712 = vmatprep.subr.bf16.mxu0 0
        %713 = vmatpush1.bf16.msra.mxu0 0
        %714 = vmatprep.mubr.bf16.mxu0 0
        %715 = vmatmul.mubr.bf16.gmra.mrb[0].mxu0 %v546
        %v716 = vpop.f32.mrb[0].mxu0
        %v717 = vadd.f32 %v509, %v716
        %v718 = vpop.f32.mrb[0].mxu0
        %v719 = vpop.f32.mrb[0].mxu0
        %v720 = vadd.f32 %v509, %v719
        %v721 = vpop.f32.mrb[0].mxu0
        %722 = vmatprep.mubr.bf16.mxu0 0
        %723 = vmatmul.mubr.bf16.gmra.mrb[0].mxu0 %v549
        %v724 = vpop.f32.mrb[0].mxu0
        %v725 = vadd.f32 %v509, %v724
        %v726 = vpop.f32.mrb[0].mxu0
        %v727 = vpop.f32.mrb[0].mxu0
        %v728 = vadd.f32 %v509, %v727
        %v729 = vpop.f32.mrb[0].mxu0
        %730 = vmatprep.mubr.bf16.mxu0 0
        %731 = vmatmul.mubr.bf16.gmra.mrb[0].mxu0 %v552
        %v732 = vpop.f32.mrb[0].mxu0
        %v733 = vadd.f32 %v509, %v732
        %v734 = vpop.f32.mrb[0].mxu0
        %v735 = vpop.f32.mrb[0].mxu0
        %v736 = vadd.f32 %v509, %v735
        %v737 = vpop.f32.mrb[0].mxu0
        %738 = vmatprep.mubr.bf16.mxu0 0
        %739 = vmatmul.mubr.bf16.gmra.mrb[0].mxu0 %v555
        %v740 = vpop.f32.mrb[0].mxu0
        %v741 = vadd.f32 %v509, %v740
        %v742 = vpop.f32.mrb[0].mxu0
        %v743 = vpop.f32.mrb[0].mxu0
        %v744 = vadd.f32 %v509, %v743
        %v745 = vpop.f32.mrb[0].mxu0
        %746 = vmatprep.mubr.bf16.mxu0 0
        %747 = vmatmul.mubr.bf16.gmra.mrb[0].mxu0 %v558
        %v748 = vpop.f32.mrb[0].mxu0
        %v749 = vadd.f32 %v509, %v748
        %v750 = vpop.f32.mrb[0].mxu0
        %v751 = vpop.f32.mrb[0].mxu0
        %v752 = vadd.f32 %v509, %v751
        %v753 = vpop.f32.mrb[0].mxu0
        %754 = vmatprep.mubr.bf16.mxu0 0
        %755 = vmatmul.mubr.bf16.gmra.mrb[0].mxu0 %v561
        %v756 = vpop.f32.mrb[0].mxu0
        %v757 = vadd.f32 %v509, %v756
        %v758 = vpop.f32.mrb[0].mxu0
        %v759 = vpop.f32.mrb[0].mxu0
        %v760 = vadd.f32 %v509, %v759
        %v761 = vpop.f32.mrb[0].mxu0
        %762 = vmatprep.mubr.bf16.mxu0 0
        %763 = vmatmul.mubr.bf16.gmra.mrb[0].mxu0 %v564
        %v764 = vpop.f32.mrb[0].mxu0
        %v765 = vadd.f32 %v509, %v764
        %v766 = vpop.f32.mrb[0].mxu0
        %v767 = vpop.f32.mrb[0].mxu0
        %v768 = vadd.f32 %v509, %v767
        %v769 = vpop.f32.mrb[0].mxu0
        %770 = vmatprep.mubr.bf16.mxu0 0
        %771 = vmatmul.mubr.bf16.gmra.mrb[0].mxu0 %v567
        %v772 = vpop.f32.mrb[0].mxu0
        %v773 = vadd.f32 %v509, %v772
        %v774 = vpop.f32.mrb[0].mxu0
        %v775 = vpop.f32.mrb[0].mxu0
        %v776 = vadd.f32 %v509, %v775
        %v777 = vpop.f32.mrb[0].mxu0
        %778 = vdwg.mxu0
        %v779 = vpack.c.bf16 %v608, %v604
        %v780 = vpack.c.bf16 %v610, %v606
        %v781 = vpack.c.bf16 %v618, %v614
        %v782 = vpack.c.bf16 %v620, %v616
        %v783 = vpack.c.bf16 %v628, %v624
        %v784 = vpack.c.bf16 %v630, %v626
        %v785 = vpack.c.bf16 %v638, %v634
        %v786 = vpack.c.bf16 %v640, %v636
        %v787 = vpack.c.bf16 %v648, %v644
        %v788 = vpack.c.bf16 %v650, %v646
        %v789 = vpack.c.bf16 %v658, %v654
        %v790 = vpack.c.bf16 %v660, %v656
        %v791 = vpack.c.bf16 %v668, %v664
        %v792 = vpack.c.bf16 %v670, %v666
        %v793 = vpack.c.bf16 %v678, %v674
        %v794 = vpack.c.bf16 %v680, %v676
        %795 = vmatprep.subr.bf16.mxu0 %v780
        %796 = vmatpush1.bf16.xpose.msra.mxu0 %v779
        %797 = vmatprep.subr.bf16.mxu0 %v782
        %798 = vmatpush1.bf16.xpose.msra.mxu0 %v781
        %799 = vmatprep.subr.bf16.mxu0 %v784
        %800 = vmatpush1.bf16.xpose.msra.mxu0 %v783
        %801 = vmatprep.subr.bf16.mxu0 %v786
        %802 = vmatpush1.bf16.xpose.msra.mxu0 %v785
        %803 = vmatprep.subr.bf16.mxu0 %v788
        %804 = vmatpush1.bf16.xpose.msra.mxu0 %v787
        %805 = vmatprep.subr.bf16.mxu0 %v790
        %806 = vmatpush1.bf16.xpose.msra.mxu0 %v789
        %807 = vmatprep.subr.bf16.mxu0 %v792
        %808 = vmatpush1.bf16.xpose.msra.mxu0 %v791
        %809 = vmatprep.subr.bf16.mxu0 %v794
        %810 = vmatpush1.bf16.xpose.msra.mxu0 %v793
        %811 = vmatprep.subr.bf16.mxu0 0
        %812 = vmatpush1.bf16.xpose.msra.mxu0 0
        %813 = vmatprep.subr.bf16.mxu0 0
        %814 = vmatpush1.bf16.xpose.msra.mxu0 0
        %815 = vmatprep.subr.bf16.mxu0 0
        %816 = vmatpush1.bf16.xpose.msra.mxu0 0
        %817 = vmatprep.subr.bf16.mxu0 0
        %818 = vmatpush1.bf16.xpose.msra.mxu0 0
        %819 = vmatprep.subr.bf16.mxu0 0
        %820 = vmatpush1.bf16.xpose.msra.mxu0 0
        %821 = vmatprep.subr.bf16.mxu0 0
        %822 = vmatpush1.bf16.xpose.msra.mxu0 0
        %823 = vmatprep.subr.bf16.mxu0 0
        %824 = vmatpush1.bf16.xpose.msra.mxu0 0
        %825 = vmatprep.subr.bf16.mxu0 0
        %826 = vmatpush1.bf16.xpose.msra.mxu0 0
        %827 = vmatprep.mubr.bf16.mxu0 %v780
        %828 = vmatmul.mubr.bf16.gmra.mrb[0].mxu0 %v779
        %v829 = vpop.f32.mrb[0].mxu0
        %v830 = vadd.f32 0.0, %v829
        %v831 = vpop.f32.mrb[0].mxu0
        %v832 = vpop.f32.mrb[0].mxu0
        %v833 = vadd.f32 0.0, %v832
        %v834 = vpop.f32.mrb[0].mxu0
        %835 = vmatprep.mubr.bf16.mxu0 %v782
        %836 = vmatmul.mubr.bf16.gmra.mrb[0].mxu0 %v781
        %v837 = vpop.f32.mrb[0].mxu0
        %v838 = vadd.f32 0.0, %v837
        %v839 = vpop.f32.mrb[0].mxu0
        %v840 = vpop.f32.mrb[0].mxu0
        %v841 = vadd.f32 0.0, %v840
        %v842 = vpop.f32.mrb[0].mxu0
        %843 = vmatprep.mubr.bf16.mxu0 %v784
        %844 = vmatmul.mubr.bf16.gmra.mrb[0].mxu0 %v783
        %v845 = vpop.f32.mrb[0].mxu0
        %v846 = vadd.f32 0.0, %v845
        %v847 = vpop.f32.mrb[0].mxu0
        %v848 = vpop.f32.mrb[0].mxu0
        %v849 = vadd.f32 0.0, %v848
        %v850 = vpop.f32.mrb[0].mxu0
        %851 = vmatprep.mubr.bf16.mxu0 %v786
        %852 = vmatmul.mubr.bf16.gmra.mrb[0].mxu0 %v785
        %v853 = vpop.f32.mrb[0].mxu0
        %v854 = vadd.f32 0.0, %v853
        %v855 = vpop.f32.mrb[0].mxu0
        %v856 = vpop.f32.mrb[0].mxu0
        %v857 = vadd.f32 0.0, %v856
        %v858 = vpop.f32.mrb[0].mxu0
        %859 = vmatprep.mubr.bf16.mxu0 %v788
        %860 = vmatmul.mubr.bf16.gmra.mrb[0].mxu0 %v787
        %v861 = vpop.f32.mrb[0].mxu0
        %v862 = vadd.f32 0.0, %v861
        %v863 = vpop.f32.mrb[0].mxu0
        %v864 = vpop.f32.mrb[0].mxu0
        %v865 = vadd.f32 0.0, %v864
        %v866 = vpop.f32.mrb[0].mxu0
        %867 = vmatprep.mubr.bf16.mxu0 %v790
        %868 = vmatmul.mubr.bf16.gmra.mrb[0].mxu0 %v789
        %v869 = vpop.f32.mrb[0].mxu0
        %v870 = vadd.f32 0.0, %v869
        %v871 = vpop.f32.mrb[0].mxu0
        %v872 = vpop.f32.mrb[0].mxu0
        %v873 = vadd.f32 0.0, %v872
        %v874 = vpop.f32.mrb[0].mxu0
        %875 = vmatprep.mubr.bf16.mxu0 %v792
        %876 = vmatmul.mubr.bf16.gmra.mrb[0].mxu0 %v791
        %v877 = vpop.f32.mrb[0].mxu0
        %v878 = vadd.f32 0.0, %v877
        %v879 = vpop.f32.mrb[0].mxu0
        %v880 = vpop.f32.mrb[0].mxu0
        %v881 = vadd.f32 0.0, %v880
        %v882 = vpop.f32.mrb[0].mxu0
        %883 = vmatprep.mubr.bf16.mxu0 %v794
        %884 = vmatmul.mubr.bf16.gmra.mrb[0].mxu0 %v793
        %v885 = vpop.f32.mrb[0].mxu0
        %v886 = vadd.f32 0.0, %v885
        %v887 = vpop.f32.mrb[0].mxu0
        %v888 = vpop.f32.mrb[0].mxu0
        %v889 = vadd.f32 0.0, %v888
        %v890 = vpop.f32.mrb[0].mxu0
        %891 = vdwg.mxu0
        %v892 = vmul.f32 %v830, 0.5
        %v893 = vmul.f32 %v833, 0.5
        %v894 = vmul.f32 %v838, 0.5
        %v895 = vmul.f32 %v841, 0.5
        %v896 = vmul.f32 %v846, 0.5
        %v897 = vmul.f32 %v849, 0.5
        %v898 = vmul.f32 %v854, 0.5
        %v899 = vmul.f32 %v857, 0.5
        %v900 = vmul.f32 %v862, 0.5
        %v901 = vmul.f32 %v865, 0.5
        %v902 = vmul.f32 %v870, 0.5
        %v903 = vmul.f32 %v873, 0.5
        %v904 = vmul.f32 %v878, 0.5
        %v905 = vmul.f32 %v881, 0.5
        %v906 = vmul.f32 %v886, 0.5
        %v907 = vmul.f32 %v889, 0.5
        %v908 = vtanh.pop %v892
        %v909 = vtanh.pop %v893
        %v910 = vtanh.pop %v894
        %v911 = vtanh.pop %v895
        %v912 = vtanh.pop %v896
        %v913 = vtanh.pop %v897
        %v914 = vtanh.pop %v898
        %v915 = vtanh.pop %v899
        %v916 = vtanh.pop %v900
        %v917 = vtanh.pop %v901
        %v918 = vtanh.pop %v902
        %v919 = vtanh.pop %v903
        %v920 = vtanh.pop %v904
        %v921 = vtanh.pop %v905
        %v922 = vtanh.pop %v906
        %v923 = vtanh.pop %v907
        %v924 = vmul.f32 %v908, 0.5
        %v925 = vmul.f32 %v909, 0.5
        %v926 = vmul.f32 %v910, 0.5
        %v927 = vmul.f32 %v911, 0.5
        %v928 = vmul.f32 %v912, 0.5
        %v929 = vmul.f32 %v913, 0.5
        %v930 = vmul.f32 %v914, 0.5
        %v931 = vmul.f32 %v915, 0.5
        %v932 = vmul.f32 %v916, 0.5
        %v933 = vmul.f32 %v917, 0.5
        %v934 = vmul.f32 %v918, 0.5
        %v935 = vmul.f32 %v919, 0.5
        %v936 = vmul.f32 %v920, 0.5
        %v937 = vmul.f32 %v921, 0.5
        %v938 = vmul.f32 %v922, 0.5
        %v939 = vmul.f32 %v923, 0.5
        %v940 = vadd.f32 %v924, 0.5
        %v941 = vadd.f32 %v925, 0.5
        %v942 = vadd.f32 %v926, 0.5
        %v943 = vadd.f32 %v927, 0.5
        %v944 = vadd.f32 %v928, 0.5
        %v945 = vadd.f32 %v929, 0.5
        %v946 = vadd.f32 %v930, 0.5
        %v947 = vadd.f32 %v931, 0.5
        %v948 = vadd.f32 %v932, 0.5
        %v949 = vadd.f32 %v933, 0.5
        %v950 = vadd.f32 %v934, 0.5
        %v951 = vadd.f32 %v935, 0.5
        %v952 = vadd.f32 %v936, 0.5
        %v953 = vadd.f32 %v937, 0.5
        %v954 = vadd.f32 %v938, 0.5
        %v955 = vadd.f32 %v939, 0.5
        %v956 = vmax.f32 %v940, 0.1
        %v957 = vmax.f32 %v941, 0.1
        %v958 = vmax.f32 %v942, 0.1
        %v959 = vmax.f32 %v943, 0.1
        %v960 = vmax.f32 %v944, 0.1
        %v961 = vmax.f32 %v945, 0.1
        %v962 = vmax.f32 %v946, 0.1
        %v963 = vmax.f32 %v947, 0.1
        %v964 = vmax.f32 %v948, 0.1
        %v965 = vmax.f32 %v949, 0.1
        %v966 = vmax.f32 %v950, 0.1
        %v967 = vmax.f32 %v951, 0.1
        %v968 = vmax.f32 %v952, 0.1
        %v969 = vmax.f32 %v953, 0.1
        %v970 = vmax.f32 %v954, 0.1
        %v971 = vmax.f32 %v955, 0.1
        %v972 = vld [vmem:[%s5] sm:$0xf]
        %v973 = vld [vmem:[%s5 + $0x4] sm:$0xf]
        %v974 = vld [vmem:[%s5 + $0x8] sm:$0xf]
        %v975 = vld [vmem:[%s5 + $0xc] sm:$0xf]
        %v976 = vld [vmem:[%s5 + $0x10] sm:$0xf]
        %v977 = vld [vmem:[%s5 + $0x14] sm:$0xf]
        %v978 = vld [vmem:[%s5 + $0x18] sm:$0xf]
        %v979 = vld [vmem:[%s5 + $0x1c] sm:$0xf]
        %v980 = vld [vmem:[%s5 + $0x20] sm:$0xf]
        %v981 = vld [vmem:[%s5 + $0x24] sm:$0xf]
        %v982 = vld [vmem:[%s5 + $0x28] sm:$0xf]
        %v983 = vld [vmem:[%s5 + $0x2c] sm:$0xf]
        %v984 = vld [vmem:[%s5 + $0x30] sm:$0xf]
        %v985 = vld [vmem:[%s5 + $0x34] sm:$0xf]
        %v986 = vld [vmem:[%s5 + $0x38] sm:$0xf]
        %v987 = vld [vmem:[%s5 + $0x3c] sm:$0xf]
        %v988 = vunpack.c.l.bf16 %v972
        %v989 = vunpack.c.l.bf16 %v973
        %v990 = vunpack.c.l.bf16 %v974
        %v991 = vunpack.c.l.bf16 %v975
        %v992 = vunpack.c.l.bf16 %v976
        %v993 = vunpack.c.l.bf16 %v977
        %v994 = vunpack.c.l.bf16 %v978
        %v995 = vunpack.c.l.bf16 %v979
        %v996 = vunpack.c.l.bf16 %v980
        %v997 = vunpack.c.l.bf16 %v981
        %v998 = vunpack.c.l.bf16 %v982
        %v999 = vunpack.c.l.bf16 %v983
        %v1000 = vunpack.c.l.bf16 %v984
        %v1001 = vunpack.c.l.bf16 %v985
        %v1002 = vunpack.c.l.bf16 %v986
        %v1003 = vunpack.c.l.bf16 %v987
        %v1004 = vmul.f32 %v956, %v988
        %v1005 = vmul.f32 %v957, %v989
        %v1006 = vmul.f32 %v958, %v990
        %v1007 = vmul.f32 %v959, %v991
        %v1008 = vmul.f32 %v960, %v992
        %v1009 = vmul.f32 %v961, %v993
        %v1010 = vmul.f32 %v962, %v994
        %v1011 = vmul.f32 %v963, %v995
        %v1012 = vmul.f32 %v964, %v996
        %v1013 = vmul.f32 %v965, %v997
        %v1014 = vmul.f32 %v966, %v998
        %v1015 = vmul.f32 %v967, %v999
        %v1016 = vmul.f32 %v968, %v1000
        %v1017 = vmul.f32 %v969, %v1001
        %v1018 = vmul.f32 %v970, %v1002
        %v1019 = vmul.f32 %v971, %v1003
        %v1020 = vlaneseq
        %v1021 = vshrl.u32 %v1020, 7
        %v1022 = vadd.s32 %v1021, 8
        %v1023 = vadd.s32 %v1021, 16
        %v1024 = vadd.s32 %v1021, 24
        %v1025 = vadd.s32 %v1021, 32
        %v1026 = vadd.s32 %v1021, 40
        %v1027 = vadd.s32 %v1021, 48
        %v1028 = vadd.s32 %v1021, 56
        %v1029 = vadd.s32 %v1021, 64
        %v1030 = vadd.s32 %v1021, 72
        %v1031 = vadd.s32 %v1021, 80
        %v1032 = vadd.s32 %v1021, 88
        %v1033 = vadd.s32 %v1021, 96
        %v1034 = vadd.s32 %v1021, 104
        %v1035 = vadd.s32 %v1021, 112
        %v1036 = vadd.s32 %v1021, 120
        %v1037 = vlaneseq
        %v1038 = vand.u32 %v1037, 127
        %vm1039 = vcmp.eq.s32.totalorder %v1021, %v1038
        %vm1040 = vcmp.eq.s32.totalorder %v1022, %v1038
        %vm1041 = vcmp.eq.s32.totalorder %v1023, %v1038
        %vm1042 = vcmp.eq.s32.totalorder %v1024, %v1038
        %vm1043 = vcmp.eq.s32.totalorder %v1025, %v1038
        %vm1044 = vcmp.eq.s32.totalorder %v1026, %v1038
        %vm1045 = vcmp.eq.s32.totalorder %v1027, %v1038
        %vm1046 = vcmp.eq.s32.totalorder %v1028, %v1038
        %vm1047 = vcmp.eq.s32.totalorder %v1029, %v1038
        %vm1048 = vcmp.eq.s32.totalorder %v1030, %v1038
        %vm1049 = vcmp.eq.s32.totalorder %v1031, %v1038
        %vm1050 = vcmp.eq.s32.totalorder %v1032, %v1038
        %vm1051 = vcmp.eq.s32.totalorder %v1033, %v1038
        %vm1052 = vcmp.eq.s32.totalorder %v1034, %v1038
        %vm1053 = vcmp.eq.s32.totalorder %v1035, %v1038
        %vm1054 = vcmp.eq.s32.totalorder %v1036, %v1038
        %v1055 = vadd.f32 %v1004, 1.0
        %v1056 = vadd.f32 %v1005, 1.0
        %v1057 = vadd.f32 %v1006, 1.0
        %v1058 = vadd.f32 %v1007, 1.0
        %v1059 = vadd.f32 %v1008, 1.0
        %v1060 = vadd.f32 %v1009, 1.0
        %v1061 = vadd.f32 %v1010, 1.0
        %v1062 = vadd.f32 %v1011, 1.0
        %v1063 = vadd.f32 %v1012, 1.0
        %v1064 = vadd.f32 %v1013, 1.0
        %v1065 = vadd.f32 %v1014, 1.0
        %v1066 = vadd.f32 %v1015, 1.0
        %v1067 = vadd.f32 %v1016, 1.0
        %v1068 = vadd.f32 %v1017, 1.0
        %v1069 = vadd.f32 %v1018, 1.0
        %v1070 = vadd.f32 %v1019, 1.0
        %v1071 = vsel %vm1039, %v1055, %v1004
        %v1072 = vsel %vm1040, %v1056, %v1005
        %v1073 = vsel %vm1041, %v1057, %v1006
        %v1074 = vsel %vm1042, %v1058, %v1007
        %v1075 = vsel %vm1043, %v1059, %v1008
        %v1076 = vsel %vm1044, %v1060, %v1009
        %v1077 = vsel %vm1045, %v1061, %v1010
        %v1078 = vsel %vm1046, %v1062, %v1011
        %v1079 = vsel %vm1047, %v1063, %v1012
        %v1080 = vsel %vm1048, %v1064, %v1013
        %v1081 = vsel %vm1049, %v1065, %v1014
        %v1082 = vsel %vm1050, %v1066, %v1015
        %v1083 = vsel %vm1051, %v1067, %v1016
        %v1084 = vsel %vm1052, %v1068, %v1017
        %v1085 = vsel %vm1053, %v1069, %v1018
        %v1086 = vsel %vm1054, %v1070, %v1019
        %1087 = vadd.xlane.f32.xlu0 %v1071
        %v1088 = vpop.xlane.xlu0 %1087
        %1089 = vadd.xlane.f32.xlu0 %v1072
        %v1090 = vpop.xlane.xlu0 %1089
        %1091 = vadd.xlane.f32.xlu0 %v1073
        %v1092 = vpop.xlane.xlu0 %1091
        %1093 = vadd.xlane.f32.xlu0 %v1074
        %v1094 = vpop.xlane.xlu0 %1093
        %1095 = vadd.xlane.f32.xlu0 %v1075
        %v1096 = vpop.xlane.xlu0 %1095
        %1097 = vadd.xlane.f32.xlu0 %v1076
        %v1098 = vpop.xlane.xlu0 %1097
        %1099 = vadd.xlane.f32.xlu0 %v1077
        %v1100 = vpop.xlane.xlu0 %1099
        %1101 = vadd.xlane.f32.xlu0 %v1078
        %v1102 = vpop.xlane.xlu0 %1101
        %1103 = vadd.xlane.f32.xlu0 %v1079
        %v1104 = vpop.xlane.xlu0 %1103
        %1105 = vadd.xlane.f32.xlu0 %v1080
        %v1106 = vpop.xlane.xlu0 %1105
        %1107 = vadd.xlane.f32.xlu0 %v1081
        %v1108 = vpop.xlane.xlu0 %1107
        %1109 = vadd.xlane.f32.xlu0 %v1082
        %v1110 = vpop.xlane.xlu0 %1109
        %1111 = vadd.xlane.f32.xlu0 %v1083
        %v1112 = vpop.xlane.xlu0 %1111
        %1113 = vadd.xlane.f32.xlu0 %v1084
        %v1114 = vpop.xlane.xlu0 %1113
        %1115 = vadd.xlane.f32.xlu0 %v1085
        %v1116 = vpop.xlane.xlu0 %1115
        %1117 = vadd.xlane.f32.xlu0 %v1086
        %v1118 = vpop.xlane.xlu0 %1117
        %v1119 = vrsqrt.pop %v1088
        %v1120 = vrsqrt.pop %v1090
        %v1121 = vrsqrt.pop %v1092
        %v1122 = vrsqrt.pop %v1094
        %v1123 = vrsqrt.pop %v1096
        %v1124 = vrsqrt.pop %v1098
        %v1125 = vrsqrt.pop %v1100
        %v1126 = vrsqrt.pop %v1102
        %v1127 = vrsqrt.pop %v1104
        %v1128 = vrsqrt.pop %v1106
        %v1129 = vrsqrt.pop %v1108
        %v1130 = vrsqrt.pop %v1110
        %v1131 = vrsqrt.pop %v1112
        %v1132 = vrsqrt.pop %v1114
        %v1133 = vrsqrt.pop %v1116
        %v1134 = vrsqrt.pop %v1118
        %v1135 = vpack.c.bf16 %v1072, %v1071
        %v1136 = vpack.c.bf16 %v1074, %v1073
        %v1137 = vpack.c.bf16 %v1076, %v1075
        %v1138 = vpack.c.bf16 %v1078, %v1077
        %v1139 = vpack.c.bf16 %v1080, %v1079
        %v1140 = vpack.c.bf16 %v1082, %v1081
        %v1141 = vpack.c.bf16 %v1084, %v1083
        %v1142 = vpack.c.bf16 %v1086, %v1085
        %v1143 = vmul.f32 %v1119, %v717
        %v1144 = vmul.f32 %v1120, %v720
        %v1145 = vmul.f32 %v1121, %v725
        %v1146 = vmul.f32 %v1122, %v728
        %v1147 = vmul.f32 %v1123, %v733
        %v1148 = vmul.f32 %v1124, %v736
        %v1149 = vmul.f32 %v1125, %v741
        %v1150 = vmul.f32 %v1126, %v744
        %v1151 = vmul.f32 %v1127, %v749
        %v1152 = vmul.f32 %v1128, %v752
        %v1153 = vmul.f32 %v1129, %v757
        %v1154 = vmul.f32 %v1130, %v760
        %v1155 = vmul.f32 %v1131, %v765
        %v1156 = vmul.f32 %v1132, %v768
        %v1157 = vmul.f32 %v1133, %v773
        %v1158 = vmul.f32 %v1134, %v776
        %v1159 = vpack.c.bf16 %v1144, %v1143
        %v1160 = vpack.c.bf16 %v1146, %v1145
        %v1161 = vpack.c.bf16 %v1148, %v1147
        %v1162 = vpack.c.bf16 %v1150, %v1149
        %v1163 = vpack.c.bf16 %v1152, %v1151
        %v1164 = vpack.c.bf16 %v1154, %v1153
        %v1165 = vpack.c.bf16 %v1156, %v1155
        %v1166 = vpack.c.bf16 %v1158, %v1157
        %1167 = vmatprep.subr.bf16.mxu0 0
        %1168 = vmatpush1.bf16.msra.mxu0 %v1159
        %1169 = vmatprep.subr.bf16.mxu0 0
        %1170 = vmatpush1.bf16.msra.mxu0 %v1160
        %1171 = vmatprep.subr.bf16.mxu0 0
        %1172 = vmatpush1.bf16.msra.mxu0 %v1161
        %1173 = vmatprep.subr.bf16.mxu0 0
        %1174 = vmatpush1.bf16.msra.mxu0 %v1162
        %1175 = vmatprep.subr.bf16.mxu0 0
        %1176 = vmatpush1.bf16.msra.mxu0 %v1163
        %1177 = vmatprep.subr.bf16.mxu0 0
        %1178 = vmatpush1.bf16.msra.mxu0 %v1164
        %1179 = vmatprep.subr.bf16.mxu0 0
        %1180 = vmatpush1.bf16.msra.mxu0 %v1165
        %1181 = vmatprep.subr.bf16.mxu0 0
        %1182 = vmatpush1.bf16.msra.mxu0 %v1166
        %1183 = vmatprep.subr.bf16.mxu0 0
        %1184 = vmatpush1.bf16.msra.mxu0 0
        %1185 = vmatprep.subr.bf16.mxu0 0
        %1186 = vmatpush1.bf16.msra.mxu0 0
        %1187 = vmatprep.subr.bf16.mxu0 0
        %1188 = vmatpush1.bf16.msra.mxu0 0
        %1189 = vmatprep.subr.bf16.mxu0 0
        %1190 = vmatpush1.bf16.msra.mxu0 0
        %1191 = vmatprep.subr.bf16.mxu0 0
        %1192 = vmatpush1.bf16.msra.mxu0 0
        %1193 = vmatprep.subr.bf16.mxu0 0
        %1194 = vmatpush1.bf16.msra.mxu0 0
        %1195 = vmatprep.subr.bf16.mxu0 0
        %1196 = vmatpush1.bf16.msra.mxu0 0
        %1197 = vmatprep.subr.bf16.mxu0 0
        %1198 = vmatpush1.bf16.msra.mxu0 0
        %1199 = vmatprep.mubr.bf16.mxu0 0
        %1200 = vmatmul.mubr.bf16.gmra.mrb[0].mxu0 %v1135
        %v1201 = vpop.f32.mrb[0].mxu0
        %v1202 = vadd.f32 0.0, %v1201
        %v1203 = vpop.f32.mrb[0].mxu0
        %v1204 = vpop.f32.mrb[0].mxu0
        %v1205 = vadd.f32 0.0, %v1204
        %v1206 = vpop.f32.mrb[0].mxu0
        %1207 = vmatprep.mubr.bf16.mxu0 0
        %1208 = vmatmul.mubr.bf16.gmra.mrb[0].mxu0 %v1136
        %v1209 = vpop.f32.mrb[0].mxu0
        %v1210 = vadd.f32 0.0, %v1209
        %v1211 = vpop.f32.mrb[0].mxu0
        %v1212 = vpop.f32.mrb[0].mxu0
        %v1213 = vadd.f32 0.0, %v1212
        %v1214 = vpop.f32.mrb[0].mxu0
        %1215 = vmatprep.mubr.bf16.mxu0 0
        %1216 = vmatmul.mubr.bf16.gmra.mrb[0].mxu0 %v1137
        %v1217 = vpop.f32.mrb[0].mxu0
        %v1218 = vadd.f32 0.0, %v1217
        %v1219 = vpop.f32.mrb[0].mxu0
        %v1220 = vpop.f32.mrb[0].mxu0
        %v1221 = vadd.f32 0.0, %v1220
        %v1222 = vpop.f32.mrb[0].mxu0
        %1223 = vmatprep.mubr.bf16.mxu0 0
        %1224 = vmatmul.mubr.bf16.gmra.mrb[0].mxu0 %v1138
        %v1225 = vpop.f32.mrb[0].mxu0
        %v1226 = vadd.f32 0.0, %v1225
        %v1227 = vpop.f32.mrb[0].mxu0
        %v1228 = vpop.f32.mrb[0].mxu0
        %v1229 = vadd.f32 0.0, %v1228
        %v1230 = vpop.f32.mrb[0].mxu0
        %1231 = vmatprep.mubr.bf16.mxu0 0
        %1232 = vmatmul.mubr.bf16.gmra.mrb[0].mxu0 %v1139
        %v1233 = vpop.f32.mrb[0].mxu0
        %v1234 = vadd.f32 0.0, %v1233
        %v1235 = vpop.f32.mrb[0].mxu0
        %v1236 = vpop.f32.mrb[0].mxu0
        %v1237 = vadd.f32 0.0, %v1236
        %v1238 = vpop.f32.mrb[0].mxu0
        %1239 = vmatprep.mubr.bf16.mxu0 0
        %1240 = vmatmul.mubr.bf16.gmra.mrb[0].mxu0 %v1140
        %v1241 = vpop.f32.mrb[0].mxu0
        %v1242 = vadd.f32 0.0, %v1241
        %v1243 = vpop.f32.mrb[0].mxu0
        %v1244 = vpop.f32.mrb[0].mxu0
        %v1245 = vadd.f32 0.0, %v1244
        %v1246 = vpop.f32.mrb[0].mxu0
        %1247 = vmatprep.mubr.bf16.mxu0 0
        %1248 = vmatmul.mubr.bf16.gmra.mrb[0].mxu0 %v1141
        %v1249 = vpop.f32.mrb[0].mxu0
        %v1250 = vadd.f32 0.0, %v1249
        %v1251 = vpop.f32.mrb[0].mxu0
        %v1252 = vpop.f32.mrb[0].mxu0
        %v1253 = vadd.f32 0.0, %v1252
        %v1254 = vpop.f32.mrb[0].mxu0
        %1255 = vmatprep.mubr.bf16.mxu0 0
        %1256 = vmatmul.mubr.bf16.gmra.mrb[0].mxu0 %v1142
        %v1257 = vpop.f32.mrb[0].mxu0
        %v1258 = vadd.f32 0.0, %v1257
        %v1259 = vpop.f32.mrb[0].mxu0
        %v1260 = vpop.f32.mrb[0].mxu0
        %v1261 = vadd.f32 0.0, %v1260
        %v1262 = vpop.f32.mrb[0].mxu0
        %1263 = vdwg.mxu0
        %v1264 = vmul.f32 %v1119, %v1202
        %v1265 = vmul.f32 %v1120, %v1205
        %v1266 = vmul.f32 %v1121, %v1210
        %v1267 = vmul.f32 %v1122, %v1213
        %v1268 = vmul.f32 %v1123, %v1218
        %v1269 = vmul.f32 %v1124, %v1221
        %v1270 = vmul.f32 %v1125, %v1226
        %v1271 = vmul.f32 %v1126, %v1229
        %v1272 = vmul.f32 %v1127, %v1234
        %v1273 = vmul.f32 %v1128, %v1237
        %v1274 = vmul.f32 %v1129, %v1242
        %v1275 = vmul.f32 %v1130, %v1245
        %v1276 = vmul.f32 %v1131, %v1250
        %v1277 = vmul.f32 %v1132, %v1253
        %v1278 = vmul.f32 %v1133, %v1258
        %v1279 = vmul.f32 %v1134, %v1261
        %vm1280 = vcmp.ge.f32.partialorder %v1264, 0.0
        %vm1281 = vcmp.ge.f32.partialorder %v1265, 0.0
        %vm1282 = vcmp.ge.f32.partialorder %v1266, 0.0
        %vm1283 = vcmp.ge.f32.partialorder %v1267, 0.0
        %vm1284 = vcmp.ge.f32.partialorder %v1268, 0.0
        %vm1285 = vcmp.ge.f32.partialorder %v1269, 0.0
        %vm1286 = vcmp.ge.f32.partialorder %v1270, 0.0
        %vm1287 = vcmp.ge.f32.partialorder %v1271, 0.0
        %vm1288 = vcmp.ge.f32.partialorder %v1272, 0.0
        %vm1289 = vcmp.ge.f32.partialorder %v1273, 0.0
        %vm1290 = vcmp.ge.f32.partialorder %v1274, 0.0
        %vm1291 = vcmp.ge.f32.partialorder %v1275, 0.0
        %vm1292 = vcmp.ge.f32.partialorder %v1276, 0.0
        %vm1293 = vcmp.ge.f32.partialorder %v1277, 0.0
        %vm1294 = vcmp.ge.f32.partialorder %v1278, 0.0
        %vm1295 = vcmp.ge.f32.partialorder %v1279, 0.0
        %v1296 = vmul.f32 %v1264, 0.01
        %v1297 = vmul.f32 %v1265, 0.01
        %v1298 = vmul.f32 %v1266, 0.01
        %v1299 = vmul.f32 %v1267, 0.01
        %v1300 = vmul.f32 %v1268, 0.01
        %v1301 = vmul.f32 %v1269, 0.01
        %v1302 = vmul.f32 %v1270, 0.01
        %v1303 = vmul.f32 %v1271, 0.01
        %v1304 = vmul.f32 %v1272, 0.01
        %v1305 = vmul.f32 %v1273, 0.01
        %v1306 = vmul.f32 %v1274, 0.01
        %v1307 = vmul.f32 %v1275, 0.01
        %v1308 = vmul.f32 %v1276, 0.01
        %v1309 = vmul.f32 %v1277, 0.01
        %v1310 = vmul.f32 %v1278, 0.01
        %v1311 = vmul.f32 %v1279, 0.01
        %v1312 = vsel %vm1280, %v1264, %v1296
        %v1313 = vsel %vm1281, %v1265, %v1297
        %v1314 = vsel %vm1282, %v1266, %v1298
        %v1315 = vsel %vm1283, %v1267, %v1299
        %v1316 = vsel %vm1284, %v1268, %v1300
        %v1317 = vsel %vm1285, %v1269, %v1301
        %v1318 = vsel %vm1286, %v1270, %v1302
        %v1319 = vsel %vm1287, %v1271, %v1303
        %v1320 = vsel %vm1288, %v1272, %v1304
        %v1321 = vsel %vm1289, %v1273, %v1305
        %v1322 = vsel %vm1290, %v1274, %v1306
        %v1323 = vsel %vm1291, %v1275, %v1307
        %v1324 = vsel %vm1292, %v1276, %v1308
        %v1325 = vsel %vm1293, %v1277, %v1309
        %v1326 = vsel %vm1294, %v1278, %v1310
        %v1327 = vsel %vm1295, %v1279, %v1311
        %1328 = vst [vmem:[%s275] sm:$0xff] %v1312
        %1329 = vst [vmem:[%s275 + $0x8] sm:$0xff] %v1313
        %1330 = vst [vmem:[%s275 + $0x10] sm:$0xff] %v1314
        %1331 = vst [vmem:[%s275 + $0x18] sm:$0xff] %v1315
        %1332 = vst [vmem:[%s275 + $0x20] sm:$0xff] %v1316
        %1333 = vst [vmem:[%s275 + $0x28] sm:$0xff] %v1317
        %1334 = vst [vmem:[%s275 + $0x30] sm:$0xff] %v1318
        %1335 = vst [vmem:[%s275 + $0x38] sm:$0xff] %v1319
        %1336 = vst [vmem:[%s275 + $0x40] sm:$0xff] %v1320
        %1337 = vst [vmem:[%s275 + $0x48] sm:$0xff] %v1321
        %1338 = vst [vmem:[%s275 + $0x50] sm:$0xff] %v1322
        %1339 = vst [vmem:[%s275 + $0x58] sm:$0xff] %v1323
        %1340 = vst [vmem:[%s275 + $0x60] sm:$0xff] %v1324
        %1341 = vst [vmem:[%s275 + $0x68] sm:$0xff] %v1325
        %1342 = vst [vmem:[%s275 + $0x70] sm:$0xff] %v1326
        %1343 = vst [vmem:[%s275 + $0x78] sm:$0xff] %v1327
        %1344 = vst [vmem:[%s282] sm:$0xff] %v1071
        %1345 = vst [vmem:[%s282 + $0x8] sm:$0xff] %v1072
        %1346 = vst [vmem:[%s282 + $0x10] sm:$0xff] %v1073
        %1347 = vst [vmem:[%s282 + $0x18] sm:$0xff] %v1074
        %1348 = vst [vmem:[%s282 + $0x20] sm:$0xff] %v1075
        %1349 = vst [vmem:[%s282 + $0x28] sm:$0xff] %v1076
        %1350 = vst [vmem:[%s282 + $0x30] sm:$0xff] %v1077
        %1351 = vst [vmem:[%s282 + $0x38] sm:$0xff] %v1078
        %1352 = vst [vmem:[%s282 + $0x40] sm:$0xff] %v1079
        %1353 = vst [vmem:[%s282 + $0x48] sm:$0xff] %v1080
        %1354 = vst [vmem:[%s282 + $0x50] sm:$0xff] %v1081
        %1355 = vst [vmem:[%s282 + $0x58] sm:$0xff] %v1082
        %1356 = vst [vmem:[%s282 + $0x60] sm:$0xff] %v1083
        %1357 = vst [vmem:[%s282 + $0x68] sm:$0xff] %v1084
        %1358 = vst [vmem:[%s282 + $0x70] sm:$0xff] %v1085
        %1359 = vst [vmem:[%s282 + $0x78] sm:$0xff] %v1086
        %s1360 = sand.u32 %s164, 1
        %s1361 = scalar_lea.sflag [#allocation3], %s1360
        %s1362 = sand.u32 %s164, 1
        %s1363 = smul.addr %s1362, 128
        %s1364 = scalar_lea.vmem [#allocation2], %s1363
        %s1365 = sand.u32 %s190, 1
        %s1366 = scalar_lea.sflag [#allocation5], %s1365
        %s1367 = sand.u32 %s190, 1
        %s1368 = smul.addr %s1367, 128
        %s1369 = scalar_lea.vmem [#allocation4], %s1368
        // Predicated region
        $region45: #{tpu_custom_call.1} parent=43 // pred_check
          %p1370 = pneg %p174
        $region46: #{tpu_custom_call.1} parent=43 // pred_check_branch
          %1372 = sbr.rel (%p1370) target = $region48
        $region47: #{tpu_custom_call.1} parent=43 // pred_region
          %s1374 = ssub.s32 2048, 2048
          %1375 = vsyncadd %s1361, %s1374
          %s1376 = smul.addr %s25, 16
          %s1377 = smul.addr %s1376, 128
          %s1378 = scalar_lea.hbm %s6, %s1377
          %s1379 = sshll.u32 %s1364, 4
          %s1380 = int_to_ptr.vmem [resolvable:$true] %s1379
          %1385 = dma.vmem_to_hbm [thread:$0]  %s1380, 2048, %s1378, %s1361, 128, 128, 8
        $region48: #{tpu_custom_call.1} parent=43 // pred_fallthru
          _
        // Predicated region
        $region49: #{tpu_custom_call.1} parent=43 // pred_check
          %p1386 = pneg %p200
        $region50: #{tpu_custom_call.1} parent=43 // pred_check_branch
          %1388 = sbr.rel (%p1386) target = $region52
        $region51: #{tpu_custom_call.1} parent=43 // pred_region
          %s1390 = ssub.s32 2048, 2048
          %1391 = vsyncadd %s1366, %s1390
          %s1392 = smul.addr %s25, 16
          %s1393 = smul.addr %s1392, 128
          %s1394 = scalar_lea.hbm %s7, %s1393
          %s1395 = sshll.u32 %s1369, 4
          %s1396 = int_to_ptr.vmem [resolvable:$true] %s1395
          %1401 = dma.vmem_to_hbm [thread:$0]  %s1396, 2048, %s1394, %s1366, 128, 128, 8
        $region52: #{tpu_custom_call.1} parent=43 // pred_fallthru
          _
      $region44: #{tpu_custom_call.1} parent=5 // pred_fallthru
        _
      %p1402 = scmp.le.s32.totalorder 2, %s20
      // Predicated region
      $region53: #{tpu_custom_call.1} parent=5 // pred_check
        %p1403 = pneg %p1402
      $region54: #{tpu_custom_call.1} parent=5 // pred_check_branch
        %1405 = sbr.rel (%p1403) target = $region56
      $region55: #{tpu_custom_call.1} parent=5 // pred_region
        %s1406 = ssub.s32 %s20, 2
        // Predicated region
        $region57: #{tpu_custom_call.1} parent=55 // pred_check
          %p1407 = pneg %p180
        $region58: #{tpu_custom_call.1} parent=55 // pred_check_branch
          %1409 = sbr.rel (%p1407) target = $region60
        $region59: #{tpu_custom_call.1} parent=55 // pred_region
          %s1410 = sand.u32 %s165, 1
          %s1411 = scalar_lea.sflag [#allocation3], %s1410
          %s1412 = sand.u32 %s165, 1
          %s1413 = smul.addr %s1412, 128
          %s1414 = scalar_lea.vmem [#allocation2], %s1413
          %1415 = dma.done %s1411, 2048
        $region60: #{tpu_custom_call.1} parent=55 // pred_fallthru
          _
        // Predicated region
        $region61: #{tpu_custom_call.1} parent=55 // pred_check
          %p1416 = pneg %p206
        $region62: #{tpu_custom_call.1} parent=55 // pred_check_branch
          %1418 = sbr.rel (%p1416) target = $region64
        $region63: #{tpu_custom_call.1} parent=55 // pred_region
          %s1419 = sand.u32 %s191, 1
          %s1420 = scalar_lea.sflag [#allocation5], %s1419
          %s1421 = sand.u32 %s191, 1
          %s1422 = smul.addr %s1421, 128
          %s1423 = scalar_lea.vmem [#allocation4], %s1422
          %1424 = dma.done %s1420, 2048
        $region64: #{tpu_custom_call.1} parent=55 // pred_fallthru
          _
      $region56: #{tpu_custom_call.1} parent=5 // pred_fallthru
        _
    $region6: #{tpu_custom_call.1} parent=1 // loop_footer
      %s24 = sadd.s32 1, %s20
    $region7: #{tpu_custom_call.1} parent=1 // loop_footer_branch
      %19 = sbr.rel target = $region3
    $region8: #{tpu_custom_call.1} parent=1 // loop_exit
      _
    %1425 = vsyncpa [#allocation3], 1
    %s1426 = scalar_lea.sflag [#allocation3], 1
    %1427 = vsyncpa %s1426, 1
    %1428 = vsyncpa [#allocation5], 1
    %s1429 = scalar_lea.sflag [#allocation5], 1
    %1430 = vsyncpa %s1429, 1

</llo_original>
